<compile_context>
chip_gen: v7x
topology: tpu7x:2x2x1
jax: 0.10.0
libtpu: 0.0.40
codegen_flags: <defaults>
</compile_context>

<pallas_src>
import math
import functools

import jax
import jax.numpy as jnp
from jax.experimental import pallas as pl
from jax.experimental.pallas import tpu as pltpu


# ---------------------------------------------------------------------------
# Kernel: one full PerceiverAttention forward (all batch items) per grid step.
# Grid axis = fg/bg branch.
# ---------------------------------------------------------------------------
def _cross_attn_kernel(lat_ref, kv_ref, g2_ref, b2_ref, gkv_ref, bkv_ref,
                       mask_ref, wq_ref, wk_ref, wv_ref, wout_ref, o_ref,
                       *, batch, n1, n2, heads, dim_head):
    eps = 1e-5
    f32 = jnp.float32
    B = batch
    L = n1 + n2
    inner = heads * dim_head
    cdt = wq_ref.dtype                      # bf16 compute dtype for MXU operands

    def layernorm(v, gamma, beta):
        mu = jnp.mean(v, axis=-1, keepdims=True)
        var = jnp.mean((v - mu) ** 2, axis=-1, keepdims=True)
        return (v - mu) * jax.lax.rsqrt(var + eps) * gamma + beta

    lat = lat_ref[...]                      # (B*n2, D)  latents, flattened rows
    kv = kv_ref[...]                        # (B*L, D)   [x ; latents], flattened rows
    if lat.dtype != f32:                    # LN / softmax math stays in f32
        lat = lat.astype(f32)
        kv = kv.astype(f32)

    # norm2(latents) for the query path; per-row (norm1|norm2) LN for the
    # pre-concatenated kv block (gamma/beta tiled at prep time).
    latn = layernorm(lat, g2_ref[...], b2_ref[...])
    kvn = layernorm(kv, gkv_ref[...], bkv_ref[...])

    latn_c = latn.astype(cdt)
    kvn_c = kvn.astype(cdt)

    # Batched projections (scale 1/sqrt(dim_head) already folded into wq).
    q = jnp.dot(latn_c, wq_ref[...], preferred_element_type=f32)   # (B*n2, inner)
    k = jnp.dot(kvn_c, wk_ref[...], preferred_element_type=f32)    # (B*L, inner)
    v = jnp.dot(kvn_c, wv_ref[...], preferred_element_type=f32)    # (B*L, inner)

    q3 = q.reshape(B, n2, inner).astype(cdt)        # n2 multiple of 8 -> clean reshape
    k3 = k.reshape(B, L, inner)                     # L  multiple of 8 -> clean reshape
    v3 = v.reshape(B, L, inner)

    # Block-diagonal head expansion: row h*L+k of mask keeps only head h's columns.
    mask_b = jnp.broadcast_to(mask_ref[...][None], (B, heads * L, inner))   # (B, H*L, inner)
    k_hat = jnp.concatenate([k3] * heads, axis=1).astype(cdt) * mask_b
    v_hat = jnp.concatenate([v3] * heads, axis=1).astype(cdt) * mask_b

    # All-head logits in one batched contraction: w[b, q, h*L + k] = q_h . k_h
    w = jnp.einsum("bqc,bkc->bqk", q3, k_hat, preferred_element_type=f32)   # (B, n2, H*L)

    # Shared per-query max is a valid stabilizer for every head's softmax
    # (constant within each head's segment).  Restore per-head max if head
    # logit ranges ever diverge by > ~80.
    e = jnp.exp(w - jnp.max(w, axis=-1, keepdims=True)).astype(cdt)

    # Numerator and per-head softmax denominator (expanded per output column)
    # via the same mask — two more batched contractions, no slicing.
    num = jnp.einsum("bqk,bkc->bqc", e, v_hat, preferred_element_type=f32)  # (B, n2, inner)
    den = jnp.einsum("bqk,bkc->bqc", e, mask_b, preferred_element_type=f32)
    attn = (num * pl.reciprocal(den, approx=True)).astype(cdt)

    out = attn.reshape(B * n2, inner)                                       # contiguous, no concat
    o = jnp.dot(out, wout_ref[...], preferred_element_type=f32)             # (B*n2, D)
    o_ref[...] = o.astype(o_ref.dtype)


# ---------------------------------------------------------------------------
# One-time parameter preparation (hoisted out of the forward path).
# ---------------------------------------------------------------------------
def prepare_cross_attention_params(params_fg, params_bg, *, batch, n1, n2,
                                   heads, dim_head,
                                   compute_dtype=jnp.bfloat16):
    D = params_fg["g1"].shape[0]
    inner = heads * dim_head
    L = n1 + n2
    scale = 1.0 / math.sqrt(dim_head)       # == (dh^-1/4 on q) * (dh^-1/4 on k)

    def stack(name):
        return jnp.stack([params_fg[name], params_bg[name]], axis=0)

    g1, b1 = stack("g1"), stack("b1")        # (2, D)
    g2, b2 = stack("g2"), stack("b2")

    # Per-row LN params for the pre-concatenated [x ; latents] block, tiled over batch.
    def kv_rows(a_x, a_lat):
        row = jnp.concatenate(
            [jnp.broadcast_to(a_x[:, None, :], (2, n1, D)),
             jnp.broadcast_to(a_lat[:, None, :], (2, n2, D))], axis=1)   # (2, L, D)
        return jnp.tile(row, (1, batch, 1))                              # (2, B*L, D)

    gkv = kv_rows(g1, g2)
    bkv = kv_rows(b1, b2)

    wq = (stack("wq") * scale).astype(compute_dtype)        # scale folded into wq
    wkv = stack("wkv").astype(compute_dtype)
    wk, wv = wkv[:, :, :inner], wkv[:, :, inner:]            # one-time split
    wout = stack("wout").astype(compute_dtype)

    # Block-diagonal head mask: mask[h*L + k, c] = 1 iff column c belongs to head h.
    head_of_row = jnp.repeat(jnp.arange(heads), L)[:, None]              # (H*L, 1)
    head_of_col = (jnp.arange(inner) // dim_head)[None, :]               # (1, inner)
    mask = (head_of_row == head_of_col).astype(compute_dtype)            # (H*L, inner)

    return {
        "g2": g2.reshape(2, 1, D), "b2": b2.reshape(2, 1, D),
        "gkv": gkv, "bkv": bkv, "mask": mask,
        "wq": wq, "wk": wk, "wv": wv, "wout": wout,
        "heads": heads, "dim_head": dim_head, "n1": n1, "n2": n2,
    }


# ---------------------------------------------------------------------------
# Forward wrapper: minimal per-call plumbing + one pallas_call for both branches.
# ---------------------------------------------------------------------------
def cross_attention_layer(x_pair, latents_pair, prepped):
    x_all = jnp.stack(x_pair, axis=0)            # (2, B, n1, D)
    lat_all = jnp.stack(latents_pair, axis=0)    # (2, B, n2, D)
    _, B, n1, D = x_all.shape
    n2 = lat_all.shape[2]
    L = n1 + n2
    heads, dim_head = prepped["heads"], prepped["dim_head"]
    inner = heads * dim_head

    # Concat + flatten in the wrapper (plain contiguous HBM copies by XLA),
    # so the kernel sees already-laid-out 2-D row blocks.
    kv_all = jnp.concatenate([x_all, lat_all], axis=2).reshape(2, B * L, D)
    lat_flat = lat_all.reshape(2, B * n2, D)

    kernel = functools.partial(_cross_attn_kernel, batch=B, n1=n1, n2=n2,
                               heads=heads, dim_head=dim_head)

    sq = pl.Squeezed()
    branch3 = lambda g: (g, 0, 0)
    const2 = lambda g: (0, 0)

    out = pl.pallas_call(
        kernel,
        out_shape=jax.ShapeDtypeStruct((2, B * n2, D), x_all.dtype),
        grid=(2,),
        in_specs=[
            pl.BlockSpec((sq, B * n2, D), branch3),        # latents (flattened rows)
            pl.BlockSpec((sq, B * L, D), branch3),         # [x ; latents] (flattened rows)
            pl.BlockSpec((sq, 1, D), branch3),             # norm2 gamma
            pl.BlockSpec((sq, 1, D), branch3),             # norm2 beta
            pl.BlockSpec((sq, B * L, D), branch3),         # per-row kv LN gamma
            pl.BlockSpec((sq, B * L, D), branch3),         # per-row kv LN beta
            pl.BlockSpec((heads * L, inner), const2),      # block-diagonal head mask
            pl.BlockSpec((sq, D, inner), branch3),         # to_q weight (scale folded)
            pl.BlockSpec((sq, D, inner), branch3),         # to_kv weight (k half)
            pl.BlockSpec((sq, D, inner), branch3),         # to_kv weight (v half)
            pl.BlockSpec((sq, inner, D), branch3),         # to_out weight
        ],
        out_specs=pl.BlockSpec((sq, B * n2, D), branch3),
        compiler_params=pltpu.CompilerParams(
            dimension_semantics=("parallel",)),            # fg/bg: one per TC on v7x
    )(lat_flat, kv_all,
      prepped["g2"], prepped["b2"], prepped["gkv"], prepped["bkv"],
      prepped["mask"], prepped["wq"], prepped["wk"], prepped["wv"],
      prepped["wout"])

    out = out.reshape(2, B, n2, D)
    return out[0], out[1]


# ---------------------------------------------------------------------------
# Deterministic parameter init + pure-JAX reference (mirrors PyTorch module).
# ---------------------------------------------------------------------------
def init_perceiver_params(key, dim, heads, dim_head):
    inner = heads * dim_head
    kq, kkv, ko, kg1, kb1, kg2, kb2 = jax.random.split(key, 7)
    return {
        "g1": 1.0 + 0.1 * jax.random.normal(kg1, (dim,), jnp.float32),
        "b1": 0.05 * jax.random.normal(kb1, (dim,), jnp.float32),
        "g2": 1.0 + 0.1 * jax.random.normal(kg2, (dim,), jnp.float32),
        "b2": 0.05 * jax.random.normal(kb2, (dim,), jnp.float32),
        "wq": 0.02 * jax.random.normal(kq, (dim, inner), jnp.float32),
        "wkv": 0.02 * jax.random.normal(kkv, (dim, 2 * inner), jnp.float32),
        "wout": 0.02 * jax.random.normal(ko, (inner, dim), jnp.float32),
    }


def perceiver_reference(x, latents, p, *, heads, dim_head):
    eps = 1e-5

    def ln(v, g, b):
        mu = jnp.mean(v, axis=-1, keepdims=True)
        var = jnp.mean((v - mu) ** 2, axis=-1, keepdims=True)
        return (v - mu) * jax.lax.rsqrt(var + eps) * g + b

    xn = ln(x, p["g1"], p["b1"])
    latn = ln(latents, p["g2"], p["b2"])
    b, n2, _ = latn.shape
    inner = heads * dim_head
    q = latn @ p["wq"]
    kv = jnp.concatenate([xn, latn], axis=1) @ p["wkv"]
    k, v = kv[..., :inner], kv[..., inner:]

    def split_heads(t):
        bs, L, _ = t.shape
        return t.reshape(bs, L, heads, dim_head).transpose(0, 2, 1, 3)

    qh, kh, vh = split_heads(q), split_heads(k), split_heads(v)
    scale = 1.0 / math.sqrt(math.sqrt(dim_head))   # dh^-1/4 on both q and k (PyTorch)
    w = jnp.einsum("bhqd,bhkd->bhqk", qh * scale, kh * scale)
    w = jax.nn.softmax(w.astype(jnp.float32), axis=-1)
    out = jnp.einsum("bhqk,bhkd->bhqd", w, vh)
    out = out.transpose(0, 2, 1, 3).reshape(b, n2, inner)
    return out @ p["wout"]


# ---------------------------------------------------------------------------
if __name__ == "__main__":
    DIM, DIM_HEAD, HEADS = 32, 8, 4
    B, N1, N2 = 2, 16, 8

    key = jax.random.PRNGKey(0)
    k_xf, k_xb, k_lf, k_lb, k_pf, k_pb = jax.random.split(key, 6)

    x_fg = jax.random.normal(k_xf, (B, N1, DIM), jnp.float32)
    x_bg = jax.random.normal(k_xb, (B, N1, DIM), jnp.float32)
    lat_fg = jax.random.normal(k_lf, (B, N2, DIM), jnp.float32)
    lat_bg = jax.random.normal(k_lb, (B, N2, DIM), jnp.float32)

    params_fg = init_perceiver_params(k_pf, DIM, HEADS, DIM_HEAD)
    params_bg = init_perceiver_params(k_pb, DIM, HEADS, DIM_HEAD)

    prepped = prepare_cross_attention_params(
        params_fg, params_bg, batch=B, n1=N1, n2=N2,
        heads=HEADS, dim_head=DIM_HEAD)

    out_fg, out_bg = cross_attention_layer(
        (x_fg, x_bg), (lat_fg, lat_bg), prepped)
    jax.block_until_ready(out_fg)
    jax.block_until_ready(out_bg)

    ref_fg = perceiver_reference(x_fg, lat_fg, params_fg, heads=HEADS, dim_head=DIM_HEAD)
    ref_bg = perceiver_reference(x_bg, lat_bg, params_bg, heads=HEADS, dim_head=DIM_HEAD)

    assert out_fg.shape == (B, N2, DIM) and out_bg.shape == (B, N2, DIM)
    assert jnp.allclose(out_fg, ref_fg, atol=1e-3, rtol=1e-3)
    assert jnp.allclose(out_bg, ref_bg, atol=1e-3, rtol=1e-3)

    print("KERNEL_OK")
</pallas_src>

<mosaic_0001>
module attributes {stable_mosaic.version = 11 : i64} {
  func.func @_cross_attn_kernel(%arg0: i32, %arg1: memref<1x16x32xf32, #tpu.memory_space<vmem>>, %arg2: memref<1x48x32xf32, #tpu.memory_space<vmem>>, %arg3: memref<1x1x32xf32, #tpu.memory_space<vmem>>, %arg4: memref<1x1x32xf32, #tpu.memory_space<vmem>>, %arg5: memref<1x48x32xf32, #tpu.memory_space<vmem>>, %arg6: memref<1x48x32xf32, #tpu.memory_space<vmem>>, %arg7: memref<96x32xbf16, #tpu.memory_space<vmem>>, %arg8: memref<1x32x32xbf16, #tpu.memory_space<vmem>>, %arg9: memref<1x32x32xbf16, #tpu.memory_space<vmem>>, %arg10: memref<1x32x32xbf16, #tpu.memory_space<vmem>>, %arg11: memref<1x32x32xbf16, #tpu.memory_space<vmem>>, %arg12: memref<1x16x32xf32, #tpu.memory_space<vmem>>) attributes {dimension_semantics = [#tpu.dimension_semantics<parallel>], iteration_bounds = array<i64: 2>, scalar_prefetch = 0 : i64, scratch_operands = 0 : i64, tpu.core_type = #tpu.core_type<tc>, window_params = [{transform_indices = @transform_0, window_bounds = array<i64: 1, 16, 32>}, {transform_indices = @transform_1, window_bounds = array<i64: 1, 48, 32>}, {transform_indices = @transform_2, window_bounds = array<i64: 1, 1, 32>}, {transform_indices = @transform_3, window_bounds = array<i64: 1, 1, 32>}, {transform_indices = @transform_4, window_bounds = array<i64: 1, 48, 32>}, {transform_indices = @transform_5, window_bounds = array<i64: 1, 48, 32>}, {pipeline_mode = #tpu.pipeline_mode<synchronous>, transform_indices = @transform_6, window_bounds = array<i64: 96, 32>}, {transform_indices = @transform_7, window_bounds = array<i64: 1, 32, 32>}, {transform_indices = @transform_8, window_bounds = array<i64: 1, 32, 32>}, {transform_indices = @transform_9, window_bounds = array<i64: 1, 32, 32>}, {transform_indices = @transform_10, window_bounds = array<i64: 1, 32, 32>}, {transform_indices = @transform_11, window_bounds = array<i64: 1, 16, 32>}]} {
    %c0 = arith.constant 0 : index
    %c0_0 = arith.constant 0 : index
    %c0_1 = arith.constant 0 : index
    %0 = vector.load %arg1[%c0, %c0_0, %c0_1] : memref<1x16x32xf32, #tpu.memory_space<vmem>>, vector<1x16x32xf32>
    %1 = vector.shape_cast %0 : vector<1x16x32xf32> to vector<16x32xf32>
    %c0_2 = arith.constant 0 : index
    %c0_3 = arith.constant 0 : index
    %c0_4 = arith.constant 0 : index
    %2 = vector.load %arg2[%c0_2, %c0_3, %c0_4] : memref<1x48x32xf32, #tpu.memory_space<vmem>>, vector<1x48x32xf32>
    %3 = vector.shape_cast %2 : vector<1x48x32xf32> to vector<48x32xf32>
    %c0_5 = arith.constant 0 : index
    %c0_6 = arith.constant 0 : index
    %c0_7 = arith.constant 0 : index
    %4 = vector.load %arg3[%c0_5, %c0_6, %c0_7] : memref<1x1x32xf32, #tpu.memory_space<vmem>>, vector<1x1x32xf32>
    %5 = vector.shape_cast %4 : vector<1x1x32xf32> to vector<1x32xf32>
    %c0_8 = arith.constant 0 : index
    %c0_9 = arith.constant 0 : index
    %c0_10 = arith.constant 0 : index
    %6 = vector.load %arg4[%c0_8, %c0_9, %c0_10] : memref<1x1x32xf32, #tpu.memory_space<vmem>>, vector<1x1x32xf32>
    %7 = vector.shape_cast %6 : vector<1x1x32xf32> to vector<1x32xf32>
    %cst = arith.constant dense<0.000000e+00> : vector<16xf32>
    %8 = vector.multi_reduction <add>, %1, %cst [1] : vector<16x32xf32> to vector<16xf32>
    %9 = vector.shape_cast %8 : vector<16xf32> to vector<16x1xf32>
    %cst_11 = arith.constant 3.200000e+01 : f32
    %10 = vector.broadcast %cst_11 : f32 to vector<16x1xf32>
    %11 = arith.divf %9, %10 : vector<16x1xf32>
    %12 = vector.broadcast %11 : vector<16x1xf32> to vector<16x32xf32>
    %13 = arith.subf %1, %12 : vector<16x32xf32>
    %14 = arith.mulf %13, %13 : vector<16x32xf32>
    %cst_12 = arith.constant dense<0.000000e+00> : vector<16xf32>
    %15 = vector.multi_reduction <add>, %14, %cst_12 [1] : vector<16x32xf32> to vector<16xf32>
    %16 = vector.shape_cast %15 : vector<16xf32> to vector<16x1xf32>
    %cst_13 = arith.constant 3.200000e+01 : f32
    %17 = vector.broadcast %cst_13 : f32 to vector<16x1xf32>
    %18 = arith.divf %16, %17 : vector<16x1xf32>
    %19 = vector.broadcast %11 : vector<16x1xf32> to vector<16x32xf32>
    %20 = arith.subf %1, %19 : vector<16x32xf32>
    %cst_14 = arith.constant 9.99999974E-6 : f32
    %21 = vector.broadcast %cst_14 : f32 to vector<16x1xf32>
    %22 = arith.addf %18, %21 : vector<16x1xf32>
    %23 = math.rsqrt %22 : vector<16x1xf32>
    %24 = vector.broadcast %23 : vector<16x1xf32> to vector<16x32xf32>
    %25 = arith.mulf %20, %24 : vector<16x32xf32>
    %26 = vector.broadcast %5 : vector<1x32xf32> to vector<16x32xf32>
    %27 = arith.mulf %25, %26 : vector<16x32xf32>
    %28 = vector.broadcast %7 : vector<1x32xf32> to vector<16x32xf32>
    %29 = arith.addf %27, %28 : vector<16x32xf32>
    %c0_15 = arith.constant 0 : index
    %c0_16 = arith.constant 0 : index
    %c0_17 = arith.constant 0 : index
    %30 = vector.load %arg5[%c0_15, %c0_16, %c0_17] : memref<1x48x32xf32, #tpu.memory_space<vmem>>, vector<1x48x32xf32>
    %31 = vector.shape_cast %30 : vector<1x48x32xf32> to vector<48x32xf32>
    %c0_18 = arith.constant 0 : index
    %c0_19 = arith.constant 0 : index
    %c0_20 = arith.constant 0 : index
    %32 = vector.load %arg6[%c0_18, %c0_19, %c0_20] : memref<1x48x32xf32, #tpu.memory_space<vmem>>, vector<1x48x32xf32>
    %33 = vector.shape_cast %32 : vector<1x48x32xf32> to vector<48x32xf32>
    %cst_21 = arith.constant dense<0.000000e+00> : vector<48xf32>
    %34 = vector.multi_reduction <add>, %3, %cst_21 [1] : vector<48x32xf32> to vector<48xf32>
    %35 = vector.shape_cast %34 : vector<48xf32> to vector<48x1xf32>
    %cst_22 = arith.constant 3.200000e+01 : f32
    %36 = vector.broadcast %cst_22 : f32 to vector<48x1xf32>
    %37 = arith.divf %35, %36 : vector<48x1xf32>
    %38 = vector.broadcast %37 : vector<48x1xf32> to vector<48x32xf32>
    %39 = arith.subf %3, %38 : vector<48x32xf32>
    %40 = arith.mulf %39, %39 : vector<48x32xf32>
    %cst_23 = arith.constant dense<0.000000e+00> : vector<48xf32>
    %41 = vector.multi_reduction <add>, %40, %cst_23 [1] : vector<48x32xf32> to vector<48xf32>
    %42 = vector.shape_cast %41 : vector<48xf32> to vector<48x1xf32>
    %cst_24 = arith.constant 3.200000e+01 : f32
    %43 = vector.broadcast %cst_24 : f32 to vector<48x1xf32>
    %44 = arith.divf %42, %43 : vector<48x1xf32>
    %45 = vector.broadcast %37 : vector<48x1xf32> to vector<48x32xf32>
    %46 = arith.subf %3, %45 : vector<48x32xf32>
    %cst_25 = arith.constant 9.99999974E-6 : f32
    %47 = vector.broadcast %cst_25 : f32 to vector<48x1xf32>
    %48 = arith.addf %44, %47 : vector<48x1xf32>
    %49 = math.rsqrt %48 : vector<48x1xf32>
    %50 = vector.broadcast %49 : vector<48x1xf32> to vector<48x32xf32>
    %51 = arith.mulf %46, %50 : vector<48x32xf32>
    %52 = arith.mulf %51, %31 : vector<48x32xf32>
    %53 = arith.addf %52, %33 : vector<48x32xf32>
    %54 = arith.truncf %29 : vector<16x32xf32> to vector<16x32xbf16>
    %55 = arith.truncf %53 : vector<48x32xf32> to vector<48x32xbf16>
    %c0_26 = arith.constant 0 : index
    %c0_27 = arith.constant 0 : index
    %c0_28 = arith.constant 0 : index
    %56 = vector.load %arg8[%c0_26, %c0_27, %c0_28] : memref<1x32x32xbf16, #tpu.memory_space<vmem>>, vector<1x32x32xbf16>
    %57 = vector.shape_cast %56 : vector<1x32x32xbf16> to vector<32x32xbf16>
    %cst_29 = arith.constant dense<0.000000e+00> : vector<16x32xf32>
    %58 = tpu.matmul %54, %57, %cst_29 {dimension_numbers = #tpu.dot_dimension_numbers<[1], [0], [0], [1], [0, 0, 1, 1], [], []>} : vector<16x32xbf16>, vector<32x32xbf16>, vector<16x32xf32> -> vector<16x32xf32>
    %c0_30 = arith.constant 0 : index
    %c0_31 = arith.constant 0 : index
    %c0_32 = arith.constant 0 : index
    %59 = vector.load %arg9[%c0_30, %c0_31, %c0_32] : memref<1x32x32xbf16, #tpu.memory_space<vmem>>, vector<1x32x32xbf16>
    %60 = vector.shape_cast %59 : vector<1x32x32xbf16> to vector<32x32xbf16>
    %cst_33 = arith.constant dense<0.000000e+00> : vector<48x32xf32>
    %61 = tpu.matmul %55, %60, %cst_33 {dimension_numbers = #tpu.dot_dimension_numbers<[1], [0], [0], [1], [0, 0, 1, 1], [], []>} : vector<48x32xbf16>, vector<32x32xbf16>, vector<48x32xf32> -> vector<48x32xf32>
    %c0_34 = arith.constant 0 : index
    %c0_35 = arith.constant 0 : index
    %c0_36 = arith.constant 0 : index
    %62 = vector.load %arg10[%c0_34, %c0_35, %c0_36] : memref<1x32x32xbf16, #tpu.memory_space<vmem>>, vector<1x32x32xbf16>
    %63 = vector.shape_cast %62 : vector<1x32x32xbf16> to vector<32x32xbf16>
    %cst_37 = arith.constant dense<0.000000e+00> : vector<48x32xf32>
    %64 = tpu.matmul %55, %63, %cst_37 {dimension_numbers = #tpu.dot_dimension_numbers<[1], [0], [0], [1], [0, 0, 1, 1], [], []>} : vector<48x32xbf16>, vector<32x32xbf16>, vector<48x32xf32> -> vector<48x32xf32>
    %65 = vector.shape_cast %58 : vector<16x32xf32> to vector<2x8x32xf32>
    %66 = arith.truncf %65 : vector<2x8x32xf32> to vector<2x8x32xbf16>
    %67 = vector.shape_cast %61 : vector<48x32xf32> to vector<2x24x32xf32>
    %68 = vector.shape_cast %64 : vector<48x32xf32> to vector<2x24x32xf32>
    %c0_38 = arith.constant 0 : index
    %c0_39 = arith.constant 0 : index
    %69 = vector.load %arg7[%c0_38, %c0_39] : memref<96x32xbf16, #tpu.memory_space<vmem>>, vector<96x32xbf16>
    %70 = vector.shape_cast %69 : vector<96x32xbf16> to vector<1x96x32xbf16>
    %71 = vector.shape_cast %70 : vector<1x96x32xbf16> to vector<1x96x32xbf16>
    %72 = vector.broadcast %71 : vector<1x96x32xbf16> to vector<2x96x32xbf16>
    %73 = tpu.concatenate %67, %67, %67, %67 in 1 : vector<2x24x32xf32>, vector<2x24x32xf32>, vector<2x24x32xf32>, vector<2x24x32xf32> -> vector<2x96x32xf32>
    %74 = arith.truncf %73 : vector<2x96x32xf32> to vector<2x96x32xbf16>
    %75 = arith.mulf %74, %72 : vector<2x96x32xbf16>
    %76 = tpu.concatenate %68, %68, %68, %68 in 1 : vector<2x24x32xf32>, vector<2x24x32xf32>, vector<2x24x32xf32>, vector<2x24x32xf32> -> vector<2x96x32xf32>
    %77 = arith.truncf %76 : vector<2x96x32xf32> to vector<2x96x32xbf16>
    %78 = arith.mulf %77, %72 : vector<2x96x32xbf16>
    "tpu.trace_start"() <{level = 10 : i32, message = "bqc,bkc->bqk"}> : () -> ()
    %cst_40 = arith.constant dense<0.000000e+00> : vector<2x8x96xf32>
    %79 = tpu.matmul %66, %75, %cst_40 {dimension_numbers = #tpu.dot_dimension_numbers<[2], [2], [1], [1], [0, 0, 0, 1, 1, 1], [0], [0]>} : vector<2x8x32xbf16>, vector<2x96x32xbf16>, vector<2x8x96xf32> -> vector<2x8x96xf32>
    "tpu.trace_stop"() : () -> ()
    %cst_41 = arith.constant dense<0xFF800000> : vector<2x8xf32>
    %80 = vector.multi_reduction <maximumf>, %79, %cst_41 [2] : vector<2x8x96xf32> to vector<2x8xf32>
    %81 = vector.shape_cast %80 : vector<2x8xf32> to vector<2x8x1xf32>
    %82 = vector.broadcast %81 : vector<2x8x1xf32> to vector<2x8x96xf32>
    %83 = arith.subf %79, %82 : vector<2x8x96xf32>
    %84 = math.exp %83 : vector<2x8x96xf32>
    %85 = arith.truncf %84 : vector<2x8x96xf32> to vector<2x8x96xbf16>
    "tpu.trace_start"() <{level = 10 : i32, message = "bqk,bkc->bqc"}> : () -> ()
    %cst_42 = arith.constant dense<0.000000e+00> : vector<2x8x32xf32>
    %86 = tpu.matmul %85, %78, %cst_42 {dimension_numbers = #tpu.dot_dimension_numbers<[2], [1], [1], [2], [0, 0, 0, 1, 1, 2], [0], [0]>} : vector<2x8x96xbf16>, vector<2x96x32xbf16>, vector<2x8x32xf32> -> vector<2x8x32xf32>
    %cst_43 = arith.constant dense<0.000000e+00> : vector<2x8x32xf32>
    %87 = tpu.matmul %85, %72, %cst_43 {dimension_numbers = #tpu.dot_dimension_numbers<[2], [1], [1], [2], [0, 0, 0, 1, 1, 2], [0], [0]>} : vector<2x8x96xbf16>, vector<2x96x32xbf16>, vector<2x8x32xf32> -> vector<2x8x32xf32>
    "tpu.trace_stop"() : () -> ()
    %88 = tpu.reciprocal %87 {approx = true} : vector<2x8x32xf32> -> vector<2x8x32xf32>
    %89 = arith.mulf %86, %88 : vector<2x8x32xf32>
    %90 = arith.truncf %89 : vector<2x8x32xf32> to vector<2x8x32xbf16>
    %91 = vector.shape_cast %90 : vector<2x8x32xbf16> to vector<16x32xbf16>
    %c0_44 = arith.constant 0 : index
    %c0_45 = arith.constant 0 : index
    %c0_46 = arith.constant 0 : index
    %92 = vector.load %arg11[%c0_44, %c0_45, %c0_46] : memref<1x32x32xbf16, #tpu.memory_space<vmem>>, vector<1x32x32xbf16>
    %93 = vector.shape_cast %92 : vector<1x32x32xbf16> to vector<32x32xbf16>
    %cst_47 = arith.constant dense<0.000000e+00> : vector<16x32xf32>
    %94 = tpu.matmul %91, %93, %cst_47 {dimension_numbers = #tpu.dot_dimension_numbers<[1], [0], [0], [1], [0, 0, 1, 1], [], []>} : vector<16x32xbf16>, vector<32x32xbf16>, vector<16x32xf32> -> vector<16x32xf32>
    %c0_48 = arith.constant 0 : index
    %c0_49 = arith.constant 0 : index
    %c0_50 = arith.constant 0 : index
    %95 = vector.load %arg12[%c0_48, %c0_49, %c0_50] : memref<1x16x32xf32, #tpu.memory_space<vmem>>, vector<1x16x32xf32>
    %96 = vector.shape_cast %95 : vector<1x16x32xf32> to vector<16x32xf32>
    %97 = vector.shape_cast %94 : vector<16x32xf32> to vector<1x16x32xf32>
    tpu.vector_store %arg12[%c0_48, %c0_49, %c0_50], %97 {strides = array<i32>} : memref<1x16x32xf32, #tpu.memory_space<vmem>>, vector<1x16x32xf32>,
    return
  }
  func.func @transform_0(%arg0: i32) -> (i32, i32, i32) {
    %c0_i32 = arith.constant 0 : i32
    %c0_i32_0 = arith.constant 0 : i32
    %c0_i32_1 = arith.constant 0 : i32
    return %arg0, %c0_i32, %c0_i32_0 : i32, i32, i32
  }
  func.func @transform_1(%arg0: i32) -> (i32, i32, i32) {
    %c0_i32 = arith.constant 0 : i32
    %c0_i32_0 = arith.constant 0 : i32
    %c0_i32_1 = arith.constant 0 : i32
    return %arg0, %c0_i32, %c0_i32_0 : i32, i32, i32
  }
  func.func @transform_2(%arg0: i32) -> (i32, i32, i32) {
    %c0_i32 = arith.constant 0 : i32
    %c0_i32_0 = arith.constant 0 : i32
    %c0_i32_1 = arith.constant 0 : i32
    return %arg0, %c0_i32, %c0_i32_0 : i32, i32, i32
  }
  func.func @transform_3(%arg0: i32) -> (i32, i32, i32) {
    %c0_i32 = arith.constant 0 : i32
    %c0_i32_0 = arith.constant 0 : i32
    %c0_i32_1 = arith.constant 0 : i32
    return %arg0, %c0_i32, %c0_i32_0 : i32, i32, i32
  }
  func.func @transform_4(%arg0: i32) -> (i32, i32, i32) {
    %c0_i32 = arith.constant 0 : i32
    %c0_i32_0 = arith.constant 0 : i32
    %c0_i32_1 = arith.constant 0 : i32
    return %arg0, %c0_i32, %c0_i32_0 : i32, i32, i32
  }
  func.func @transform_5(%arg0: i32) -> (i32, i32, i32) {
    %c0_i32 = arith.constant 0 : i32
    %c0_i32_0 = arith.constant 0 : i32
    %c0_i32_1 = arith.constant 0 : i32
    return %arg0, %c0_i32, %c0_i32_0 : i32, i32, i32
  }
  func.func @transform_6(%arg0: i32) -> (i32, i32) {
    %c0_i32 = arith.constant 0 : i32
    %c0_i32_0 = arith.constant 0 : i32
    %c0_i32_1 = arith.constant 0 : i32
    return %c0_i32, %c0_i32_0 : i32, i32
  }
  func.func @transform_7(%arg0: i32) -> (i32, i32, i32) {
    %c0_i32 = arith.constant 0 : i32
    %c0_i32_0 = arith.constant 0 : i32
    %c0_i32_1 = arith.constant 0 : i32
    return %arg0, %c0_i32, %c0_i32_0 : i32, i32, i32
  }
  func.func @transform_8(%arg0: i32) -> (i32, i32, i32) {
    %c0_i32 = arith.constant 0 : i32
    %c0_i32_0 = arith.constant 0 : i32
    %c0_i32_1 = arith.constant 0 : i32
    return %arg0, %c0_i32, %c0_i32_0 : i32, i32, i32
  }
  func.func @transform_9(%arg0: i32) -> (i32, i32, i32) {
    %c0_i32 = arith.constant 0 : i32
    %c0_i32_0 = arith.constant 0 : i32
    %c0_i32_1 = arith.constant 0 : i32
    return %arg0, %c0_i32, %c0_i32_0 : i32, i32, i32
  }
  func.func @transform_10(%arg0: i32) -> (i32, i32, i32) {
    %c0_i32 = arith.constant 0 : i32
    %c0_i32_0 = arith.constant 0 : i32
    %c0_i32_1 = arith.constant 0 : i32
    return %arg0, %c0_i32, %c0_i32_0 : i32, i32, i32
  }
  func.func @transform_11(%arg0: i32) -> (i32, i32, i32) {
    %c0_i32 = arith.constant 0 : i32
    %c0_i32_0 = arith.constant 0 : i32
    %c0_i32_1 = arith.constant 0 : i32
    return %arg0, %c0_i32, %c0_i32_0 : i32, i32, i32
  }
}

</mosaic_0001>

<llo_original>
// kernel: tpu_custom_call.1
$region0: #{tpu_custom_call.1}
  #allocation0 [shape = 'u32[]', space=smem, size = 0x4, offset = 0x4, fixed_abs, tag = 'smem constant byte address 0x4 - core index']
  #allocation1 [shape = 'u32[144,128]{1,0:T(1,128)}', space=vmem, size = 0x12000, scoped, tag = 'internal scratch']
  %s0 = inlined_call_operand.vmem [shape: f32[2,16,32], index: 0, kind: input, shape index: {}]
  %s1 = inlined_call_operand.vmem [shape: f32[2,48,32], index: 1, kind: input, shape index: {}]
  %s2 = inlined_call_operand.vmem [shape: f32[2,1,32], index: 2, kind: input, shape index: {}]
  %s3 = inlined_call_operand.vmem [shape: f32[2,1,32], index: 3, kind: input, shape index: {}]
  %s4 = inlined_call_operand.vmem [shape: f32[2,48,32], index: 4, kind: input, shape index: {}]
  %s5 = inlined_call_operand.vmem [shape: f32[2,48,32], index: 5, kind: input, shape index: {}]
  %s6 = inlined_call_operand.vmem [shape: bf16[96,32], index: 6, kind: input, shape index: {}]
  %s7 = inlined_call_operand.vmem [shape: bf16[2,32,32], index: 7, kind: input, shape index: {}]
  %s8 = inlined_call_operand.vmem [shape: bf16[2,32,32], index: 8, kind: input, shape index: {}]
  %s9 = inlined_call_operand.vmem [shape: bf16[2,32,32], index: 9, kind: input, shape index: {}]
  %s10 = inlined_call_operand.vmem [shape: bf16[2,32,32], index: 10, kind: input, shape index: {}]
  %s11 = inlined_call_operand.hbm [shape: f32[2,16,32], index: 11, kind: output, shape index: {}]
  %s12 = sld [smem:[#allocation0]]
  $region77: #{tpu_custom_call.1} parent=0
    _
  %s14 = ssub.s32 1, %s12
  %s15 = scalar_select 0, %s14, %s12
  $region1: #{tpu_custom_call.1} parent=0
    #allocation2 [shape = 'u8[16384]{0}', space=vmem, size = 0x4000, scoped, tag = 'output window, operand 0']
    #allocation3 [shape = 's32[2]{0}', space=sflag, size = 0x8, scoped, tag = 'scoped memory for tpu_custom_call.1']
    %16 = vsyncpa [#allocation3], 0
    %s17 = scalar_lea.sflag [#allocation3], 1
    %18 = vsyncpa %s17, 0
    loop: start=0, step=1, limit=4
    $region2: #{tpu_custom_call.1} parent=1 // loop_pre_header
      _
    $region3: #{tpu_custom_call.1} parent=1 // loop_header
      %s20 = sphi 0, %s24
      %p21 = scmp.ge.s32.totalorder %s20, 4
      %s30 = sphi 0, %s32
      %s33 = sphi 0, %s30
      %s34 = sphi 0, %s33
      %s50 = sphi 0, %s34
      %s56 = sphi 0, %s58
      %s59 = sphi 0, %s56
      %s60 = sphi 0, %s59
      %s76 = sphi 0, %s60
      %s82 = sphi 0, %s84
      %s85 = sphi 0, %s82
      %s86 = sphi 0, %s85
      %s102 = sphi 0, %s86
      %s108 = sphi 0, %s110
      %s111 = sphi 0, %s108
      %s112 = sphi 0, %s111
      %s128 = sphi 0, %s112
      %s134 = sphi 0, %s136
      %s137 = sphi 0, %s134
      %s138 = sphi 0, %s137
      %s154 = sphi 0, %s138
      %s160 = sphi 0, %s162
      %s163 = sphi 0, %s160
      %s164 = sphi 0, %s163
      %s180 = sphi 0, %s164
      %s184 = sphi 0, %s184
      %s186 = sphi 0, %s184
      %s187 = sphi 0, %s186
      %s201 = sphi 0, %s187
      %s207 = sphi 0, %s209
      %s210 = sphi 0, %s207
      %s211 = sphi 0, %s210
      %s227 = sphi 0, %s211
      %s233 = sphi 0, %s235
      %s236 = sphi 0, %s233
      %s237 = sphi 0, %s236
      %s253 = sphi 0, %s237
      %s259 = sphi 0, %s261
      %s262 = sphi 0, %s259
      %s263 = sphi 0, %s262
      %s279 = sphi 0, %s263
      %s285 = sphi 0, %s287
      %s288 = sphi 0, %s285
      %s289 = sphi 0, %s288
      %s305 = sphi 0, %s289
      %s311 = sphi 0, %s313
      %s314 = sphi 0, %s311
      %s315 = sphi 0, %s314
      %s331 = sphi 0, %s315
    $region4: #{tpu_custom_call.1} parent=1 // loop_header_branch
      %23 = sbr.rel (%p21) target = $region8
    $region5: #{tpu_custom_call.1} parent=1 // loop_body
      %s25 = ssub.s32 %s20, 1
      %s26 = ssub.s32 %s20, 2
      %s27 = sadd.s32 %s20, 1
      %s28 = ssub.s32 %s20, %s27
      %p29 = scmp.eq.s32.totalorder %s28, 0
      %s31 = sadd.s32 %s30, 1
      %s32 = scalar_select %p29, %s30, %s31
      %p35 = pneg %p29
      %p36 = scmp.eq.s32.totalorder %s20, 1
      %p37 = por %p35, %p36
      %p38 = scmp.ne.s32.totalorder %s30, %s33
      %p39 = scmp.eq.s32.totalorder %s20, 0
      %p40 = por %p38, %p39
      %p41 = scmp.ne.s32.totalorder %s30, %s33
      %p42 = scmp.eq.s32.totalorder %s25, 1
      %p43 = por %p41, %p42
      %p44 = scmp.ne.s32.totalorder %s33, %s34
      %p45 = scmp.eq.s32.totalorder %s25, 0
      %p46 = por %p44, %p45
      %p47 = scmp.ne.s32.totalorder %s33, %s34
      %p48 = scmp.eq.s32.totalorder %s26, 1
      %p49 = por %p47, %p48
      %p51 = scmp.ne.s32.totalorder %s34, %s50
      %p52 = scmp.eq.s32.totalorder %s26, 0
      %p53 = por %p51, %p52
      %s54 = ssub.s32 %s20, %s27
      %p55 = scmp.eq.s32.totalorder %s54, 0
      %s57 = sadd.s32 %s56, 1
      %s58 = scalar_select %p55, %s56, %s57
      %p61 = pneg %p55
      %p62 = scmp.eq.s32.totalorder %s20, 1
      %p63 = por %p61, %p62
      %p64 = scmp.ne.s32.totalorder %s56, %s59
      %p65 = scmp.eq.s32.totalorder %s20, 0
      %p66 = por %p64, %p65
      %p67 = scmp.ne.s32.totalorder %s56, %s59
      %p68 = scmp.eq.s32.totalorder %s25, 1
      %p69 = por %p67, %p68
      %p70 = scmp.ne.s32.totalorder %s59, %s60
      %p71 = scmp.eq.s32.totalorder %s25, 0
      %p72 = por %p70, %p71
      %p73 = scmp.ne.s32.totalorder %s59, %s60
      %p74 = scmp.eq.s32.totalorder %s26, 1
      %p75 = por %p73, %p74
      %p77 = scmp.ne.s32.totalorder %s60, %s76
      %p78 = scmp.eq.s32.totalorder %s26, 0
      %p79 = por %p77, %p78
      %s80 = ssub.s32 %s20, %s27
      %p81 = scmp.eq.s32.totalorder %s80, 0
      %s83 = sadd.s32 %s82, 1
      %s84 = scalar_select %p81, %s82, %s83
      %p87 = pneg %p81
      %p88 = scmp.eq.s32.totalorder %s20, 1
      %p89 = por %p87, %p88
      %p90 = scmp.ne.s32.totalorder %s82, %s85
      %p91 = scmp.eq.s32.totalorder %s20, 0
      %p92 = por %p90, %p91
      %p93 = scmp.ne.s32.totalorder %s82, %s85
      %p94 = scmp.eq.s32.totalorder %s25, 1
      %p95 = por %p93, %p94
      %p96 = scmp.ne.s32.totalorder %s85, %s86
      %p97 = scmp.eq.s32.totalorder %s25, 0
      %p98 = por %p96, %p97
      %p99 = scmp.ne.s32.totalorder %s85, %s86
      %p100 = scmp.eq.s32.totalorder %s26, 1
      %p101 = por %p99, %p100
      %p103 = scmp.ne.s32.totalorder %s86, %s102
      %p104 = scmp.eq.s32.totalorder %s26, 0
      %p105 = por %p103, %p104
      %s106 = ssub.s32 %s20, %s27
      %p107 = scmp.eq.s32.totalorder %s106, 0
      %s109 = sadd.s32 %s108, 1
      %s110 = scalar_select %p107, %s108, %s109
      %p113 = pneg %p107
      %p114 = scmp.eq.s32.totalorder %s20, 1
      %p115 = por %p113, %p114
      %p116 = scmp.ne.s32.totalorder %s108, %s111
      %p117 = scmp.eq.s32.totalorder %s20, 0
      %p118 = por %p116, %p117
      %p119 = scmp.ne.s32.totalorder %s108, %s111
      %p120 = scmp.eq.s32.totalorder %s25, 1
      %p121 = por %p119, %p120
      %p122 = scmp.ne.s32.totalorder %s111, %s112
      %p123 = scmp.eq.s32.totalorder %s25, 0
      %p124 = por %p122, %p123
      %p125 = scmp.ne.s32.totalorder %s111, %s112
      %p126 = scmp.eq.s32.totalorder %s26, 1
      %p127 = por %p125, %p126
      %p129 = scmp.ne.s32.totalorder %s112, %s128
      %p130 = scmp.eq.s32.totalorder %s26, 0
      %p131 = por %p129, %p130
      %s132 = ssub.s32 %s20, %s27
      %p133 = scmp.eq.s32.totalorder %s132, 0
      %s135 = sadd.s32 %s134, 1
      %s136 = scalar_select %p133, %s134, %s135
      %p139 = pneg %p133
      %p140 = scmp.eq.s32.totalorder %s20, 1
      %p141 = por %p139, %p140
      %p142 = scmp.ne.s32.totalorder %s134, %s137
      %p143 = scmp.eq.s32.totalorder %s20, 0
      %p144 = por %p142, %p143
      %p145 = scmp.ne.s32.totalorder %s134, %s137
      %p146 = scmp.eq.s32.totalorder %s25, 1
      %p147 = por %p145, %p146
      %p148 = scmp.ne.s32.totalorder %s137, %s138
      %p149 = scmp.eq.s32.totalorder %s25, 0
      %p150 = por %p148, %p149
      %p151 = scmp.ne.s32.totalorder %s137, %s138
      %p152 = scmp.eq.s32.totalorder %s26, 1
      %p153 = por %p151, %p152
      %p155 = scmp.ne.s32.totalorder %s138, %s154
      %p156 = scmp.eq.s32.totalorder %s26, 0
      %p157 = por %p155, %p156
      %s158 = ssub.s32 %s20, %s27
      %p159 = scmp.eq.s32.totalorder %s158, 0
      %s161 = sadd.s32 %s160, 1
      %s162 = scalar_select %p159, %s160, %s161
      %p165 = pneg %p159
      %p166 = scmp.eq.s32.totalorder %s20, 1
      %p167 = por %p165, %p166
      %p168 = scmp.ne.s32.totalorder %s160, %s163
      %p169 = scmp.eq.s32.totalorder %s20, 0
      %p170 = por %p168, %p169
      %p171 = scmp.ne.s32.totalorder %s160, %s163
      %p172 = scmp.eq.s32.totalorder %s25, 1
      %p173 = por %p171, %p172
      %p174 = scmp.ne.s32.totalorder %s163, %s164
      %p175 = scmp.eq.s32.totalorder %s25, 0
      %p176 = por %p174, %p175
      %p177 = scmp.ne.s32.totalorder %s163, %s164
      %p178 = scmp.eq.s32.totalorder %s26, 1
      %p179 = por %p177, %p178
      %p181 = scmp.ne.s32.totalorder %s164, %s180
      %p182 = scmp.eq.s32.totalorder %s26, 0
      %p183 = por %p181, %p182
      %s185 = sadd.s32 %s184, 1
      %p188 = scmp.eq.s32.totalorder %s20, 1
      %p189 = scmp.ne.s32.totalorder %s184, %s186
      %p190 = scmp.eq.s32.totalorder %s20, 0
      %p191 = por %p189, %p190
      %p192 = scmp.ne.s32.totalorder %s184, %s186
      %p193 = scmp.eq.s32.totalorder %s25, 1
      %p194 = por %p192, %p193
      %p195 = scmp.ne.s32.totalorder %s186, %s187
      %p196 = scmp.eq.s32.totalorder %s25, 0
      %p197 = por %p195, %p196
      %p198 = scmp.ne.s32.totalorder %s186, %s187
      %p199 = scmp.eq.s32.totalorder %s26, 1
      %p200 = por %p198, %p199
      %p202 = scmp.ne.s32.totalorder %s187, %s201
      %p203 = scmp.eq.s32.totalorder %s26, 0
      %p204 = por %p202, %p203
      %s205 = ssub.s32 %s20, %s27
      %p206 = scmp.eq.s32.totalorder %s205, 0
      %s208 = sadd.s32 %s207, 1
      %s209 = scalar_select %p206, %s207, %s208
      %p212 = pneg %p206
      %p213 = scmp.eq.s32.totalorder %s20, 1
      %p214 = por %p212, %p213
      %p215 = scmp.ne.s32.totalorder %s207, %s210
      %p216 = scmp.eq.s32.totalorder %s20, 0
      %p217 = por %p215, %p216
      %p218 = scmp.ne.s32.totalorder %s207, %s210
      %p219 = scmp.eq.s32.totalorder %s25, 1
      %p220 = por %p218, %p219
      %p221 = scmp.ne.s32.totalorder %s210, %s211
      %p222 = scmp.eq.s32.totalorder %s25, 0
      %p223 = por %p221, %p222
      %p224 = scmp.ne.s32.totalorder %s210, %s211
      %p225 = scmp.eq.s32.totalorder %s26, 1
      %p226 = por %p224, %p225
      %p228 = scmp.ne.s32.totalorder %s211, %s227
      %p229 = scmp.eq.s32.totalorder %s26, 0
      %p230 = por %p228, %p229
      %s231 = ssub.s32 %s20, %s27
      %p232 = scmp.eq.s32.totalorder %s231, 0
      %s234 = sadd.s32 %s233, 1
      %s235 = scalar_select %p232, %s233, %s234
      %p238 = pneg %p232
      %p239 = scmp.eq.s32.totalorder %s20, 1
      %p240 = por %p238, %p239
      %p241 = scmp.ne.s32.totalorder %s233, %s236
      %p242 = scmp.eq.s32.totalorder %s20, 0
      %p243 = por %p241, %p242
      %p244 = scmp.ne.s32.totalorder %s233, %s236
      %p245 = scmp.eq.s32.totalorder %s25, 1
      %p246 = por %p244, %p245
      %p247 = scmp.ne.s32.totalorder %s236, %s237
      %p248 = scmp.eq.s32.totalorder %s25, 0
      %p249 = por %p247, %p248
      %p250 = scmp.ne.s32.totalorder %s236, %s237
      %p251 = scmp.eq.s32.totalorder %s26, 1
      %p252 = por %p250, %p251
      %p254 = scmp.ne.s32.totalorder %s237, %s253
      %p255 = scmp.eq.s32.totalorder %s26, 0
      %p256 = por %p254, %p255
      %s257 = ssub.s32 %s20, %s27
      %p258 = scmp.eq.s32.totalorder %s257, 0
      %s260 = sadd.s32 %s259, 1
      %s261 = scalar_select %p258, %s259, %s260
      %p264 = pneg %p258
      %p265 = scmp.eq.s32.totalorder %s20, 1
      %p266 = por %p264, %p265
      %p267 = scmp.ne.s32.totalorder %s259, %s262
      %p268 = scmp.eq.s32.totalorder %s20, 0
      %p269 = por %p267, %p268
      %p270 = scmp.ne.s32.totalorder %s259, %s262
      %p271 = scmp.eq.s32.totalorder %s25, 1
      %p272 = por %p270, %p271
      %p273 = scmp.ne.s32.totalorder %s262, %s263
      %p274 = scmp.eq.s32.totalorder %s25, 0
      %p275 = por %p273, %p274
      %p276 = scmp.ne.s32.totalorder %s262, %s263
      %p277 = scmp.eq.s32.totalorder %s26, 1
      %p278 = por %p276, %p277
      %p280 = scmp.ne.s32.totalorder %s263, %s279
      %p281 = scmp.eq.s32.totalorder %s26, 0
      %p282 = por %p280, %p281
      %s283 = ssub.s32 %s20, %s27
      %p284 = scmp.eq.s32.totalorder %s283, 0
      %s286 = sadd.s32 %s285, 1
      %s287 = scalar_select %p284, %s285, %s286
      %p290 = pneg %p284
      %p291 = scmp.eq.s32.totalorder %s20, 1
      %p292 = por %p290, %p291
      %p293 = scmp.ne.s32.totalorder %s285, %s288
      %p294 = scmp.eq.s32.totalorder %s20, 0
      %p295 = por %p293, %p294
      %p296 = scmp.ne.s32.totalorder %s285, %s288
      %p297 = scmp.eq.s32.totalorder %s25, 1
      %p298 = por %p296, %p297
      %p299 = scmp.ne.s32.totalorder %s288, %s289
      %p300 = scmp.eq.s32.totalorder %s25, 0
      %p301 = por %p299, %p300
      %p302 = scmp.ne.s32.totalorder %s288, %s289
      %p303 = scmp.eq.s32.totalorder %s26, 1
      %p304 = por %p302, %p303
      %p306 = scmp.ne.s32.totalorder %s289, %s305
      %p307 = scmp.eq.s32.totalorder %s26, 0
      %p308 = por %p306, %p307
      %s309 = ssub.s32 %s20, %s27
      %p310 = scmp.eq.s32.totalorder %s309, 0
      %s312 = sadd.s32 %s311, 1
      %s313 = scalar_select %p310, %s311, %s312
      %p316 = pneg %p310
      %p317 = scmp.eq.s32.totalorder %s20, 1
      %p318 = por %p316, %p317
      %p319 = scmp.ne.s32.totalorder %s311, %s314
      %p320 = scmp.eq.s32.totalorder %s20, 0
      %p321 = por %p319, %p320
      %p322 = scmp.ne.s32.totalorder %s311, %s314
      %p323 = scmp.eq.s32.totalorder %s25, 1
      %p324 = por %p322, %p323
      %p325 = scmp.ne.s32.totalorder %s314, %s315
      %p326 = scmp.eq.s32.totalorder %s25, 0
      %p327 = por %p325, %p326
      %p328 = scmp.ne.s32.totalorder %s314, %s315
      %p329 = scmp.eq.s32.totalorder %s26, 1
      %p330 = por %p328, %p329
      %p332 = scmp.ne.s32.totalorder %s315, %s331
      %p333 = scmp.eq.s32.totalorder %s26, 0
      %p334 = por %p332, %p333
      %p335 = scmp.le.s32.totalorder 1, %s20
      %p336 = scmp.lt.s32.totalorder %s20, 3
      %p337 = pnand %p335, %p336
      %p338 = pneg %p337
      // Predicated region
      $region9: #{tpu_custom_call.1} parent=5 // pred_check
        _
      $region10: #{tpu_custom_call.1} parent=5 // pred_check_branch
        %340 = sbr.rel (%p337) target = $region12
      $region11: #{tpu_custom_call.1} parent=5 // pred_region
        %s341 = ssub.s32 %s20, 1
        // Predicated region
        $region13: #{tpu_custom_call.1} parent=11 // pred_check
          %p342 = pneg %p197
        $region14: #{tpu_custom_call.1} parent=11 // pred_check_branch
          %344 = sbr.rel (%p342) target = $region16
        $region15: #{tpu_custom_call.1} parent=11 // pred_region
          _
        $region16: #{tpu_custom_call.1} parent=11 // pred_fallthru
          _
      $region12: #{tpu_custom_call.1} parent=5 // pred_fallthru
        _
      %p345 = scmp.lt.s32.totalorder %s20, 2
      // Predicated region
      $region17: #{tpu_custom_call.1} parent=5 // pred_check
        %p346 = pneg %p345
      $region18: #{tpu_custom_call.1} parent=5 // pred_check_branch
        %348 = sbr.rel (%p346) target = $region20
      $region19: #{tpu_custom_call.1} parent=5 // pred_region
        // Predicated region
        $region21: #{tpu_custom_call.1} parent=19 // pred_check
          %p349 = pneg %p40
        $region22: #{tpu_custom_call.1} parent=19 // pred_check_branch
          %351 = sbr.rel (%p349) target = $region24
        $region23: #{tpu_custom_call.1} parent=19 // pred_region
          %p352 = scmp.lt.s32.totalorder %s20, 1
          %s353 = scalar_select %p352, %s20, 1
          %s354 = smul.addr %s353, 2
          %s355 = smul.addr %s354, 8
          %s356 = scalar_lea.vmem %s0, %s355
        $region24: #{tpu_custom_call.1} parent=19 // pred_fallthru
          _
        // Predicated region
        $region25: #{tpu_custom_call.1} parent=19 // pred_check
          %p357 = pneg %p66
        $region26: #{tpu_custom_call.1} parent=19 // pred_check_branch
          %359 = sbr.rel (%p357) target = $region28
        $region27: #{tpu_custom_call.1} parent=19 // pred_region
          %p360 = scmp.lt.s32.totalorder %s20, 1
          %s361 = scalar_select %p360, %s20, 1
          %s362 = smul.addr %s361, 6
          %s363 = smul.addr %s362, 8
          %s364 = scalar_lea.vmem %s1, %s363
        $region28: #{tpu_custom_call.1} parent=19 // pred_fallthru
          _
        // Predicated region
        $region29: #{tpu_custom_call.1} parent=19 // pred_check
          %p365 = pneg %p92
        $region30: #{tpu_custom_call.1} parent=19 // pred_check_branch
          %367 = sbr.rel (%p365) target = $region32
        $region31: #{tpu_custom_call.1} parent=19 // pred_region
          %p368 = scmp.lt.s32.totalorder %s20, 1
          %s369 = scalar_select %p368, %s20, 1
          %s370 = scalar_lea.vmem %s2, %s369
        $region32: #{tpu_custom_call.1} parent=19 // pred_fallthru
          _
        // Predicated region
        $region33: #{tpu_custom_call.1} parent=19 // pred_check
          %p371 = pneg %p118
        $region34: #{tpu_custom_call.1} parent=19 // pred_check_branch
          %373 = sbr.rel (%p371) target = $region36
        $region35: #{tpu_custom_call.1} parent=19 // pred_region
          %p374 = scmp.lt.s32.totalorder %s20, 1
          %s375 = scalar_select %p374, %s20, 1
          %s376 = scalar_lea.vmem %s3, %s375
        $region36: #{tpu_custom_call.1} parent=19 // pred_fallthru
          _
        // Predicated region
        $region37: #{tpu_custom_call.1} parent=19 // pred_check
          %p377 = pneg %p144
        $region38: #{tpu_custom_call.1} parent=19 // pred_check_branch
          %379 = sbr.rel (%p377) target = $region40
        $region39: #{tpu_custom_call.1} parent=19 // pred_region
          %p380 = scmp.lt.s32.totalorder %s20, 1
          %s381 = scalar_select %p380, %s20, 1
          %s382 = smul.addr %s381, 6
          %s383 = smul.addr %s382, 8
          %s384 = scalar_lea.vmem %s4, %s383
        $region40: #{tpu_custom_call.1} parent=19 // pred_fallthru
          _
        // Predicated region
        $region41: #{tpu_custom_call.1} parent=19 // pred_check
          %p385 = pneg %p170
        $region42: #{tpu_custom_call.1} parent=19 // pred_check_branch
          %387 = sbr.rel (%p385) target = $region44
        $region43: #{tpu_custom_call.1} parent=19 // pred_region
          %p388 = scmp.lt.s32.totalorder %s20, 1
          %s389 = scalar_select %p388, %s20, 1
          %s390 = smul.addr %s389, 6
          %s391 = smul.addr %s390, 8
          %s392 = scalar_lea.vmem %s5, %s391
        $region44: #{tpu_custom_call.1} parent=19 // pred_fallthru
          _
        // Predicated region
        $region45: #{tpu_custom_call.1} parent=19 // pred_check
          %p393 = pneg %p217
        $region46: #{tpu_custom_call.1} parent=19 // pred_check_branch
          %395 = sbr.rel (%p393) target = $region48
        $region47: #{tpu_custom_call.1} parent=19 // pred_region
          %p396 = scmp.lt.s32.totalorder %s20, 1
          %s397 = scalar_select %p396, %s20, 1
          %s398 = smul.addr %s397, 4
          %s399 = smul.addr %s398, 4
          %s400 = scalar_lea.vmem %s7, %s399
        $region48: #{tpu_custom_call.1} parent=19 // pred_fallthru
          _
        // Predicated region
        $region49: #{tpu_custom_call.1} parent=19 // pred_check
          %p401 = pneg %p243
        $region50: #{tpu_custom_call.1} parent=19 // pred_check_branch
          %403 = sbr.rel (%p401) target = $region52
        $region51: #{tpu_custom_call.1} parent=19 // pred_region
          %p404 = scmp.lt.s32.totalorder %s20, 1
          %s405 = scalar_select %p404, %s20, 1
          %s406 = smul.addr %s405, 4
          %s407 = smul.addr %s406, 4
          %s408 = scalar_lea.vmem %s8, %s407
        $region52: #{tpu_custom_call.1} parent=19 // pred_fallthru
          _
        // Predicated region
        $region53: #{tpu_custom_call.1} parent=19 // pred_check
          %p409 = pneg %p269
        $region54: #{tpu_custom_call.1} parent=19 // pred_check_branch
          %411 = sbr.rel (%p409) target = $region56
        $region55: #{tpu_custom_call.1} parent=19 // pred_region
          %p412 = scmp.lt.s32.totalorder %s20, 1
          %s413 = scalar_select %p412, %s20, 1
          %s414 = smul.addr %s413, 4
          %s415 = smul.addr %s414, 4
          %s416 = scalar_lea.vmem %s9, %s415
        $region56: #{tpu_custom_call.1} parent=19 // pred_fallthru
          _
        // Predicated region
        $region57: #{tpu_custom_call.1} parent=19 // pred_check
          %p417 = pneg %p295
        $region58: #{tpu_custom_call.1} parent=19 // pred_check_branch
          %419 = sbr.rel (%p417) target = $region60
        $region59: #{tpu_custom_call.1} parent=19 // pred_region
          %p420 = scmp.lt.s32.totalorder %s20, 1
          %s421 = scalar_select %p420, %s20, 1
          %s422 = smul.addr %s421, 4
          %s423 = smul.addr %s422, 4
          %s424 = scalar_lea.vmem %s10, %s423
        $region60: #{tpu_custom_call.1} parent=19 // pred_fallthru
          _
      $region20: #{tpu_custom_call.1} parent=5 // pred_fallthru
        _
      %p425 = scmp.le.s32.totalorder 1, %s20
      %p426 = scmp.lt.s32.totalorder %s20, 3
      %p427 = pnand %p425, %p426
      %p428 = pneg %p427
      // Predicated region
      $region61: #{tpu_custom_call.1} parent=5 // pred_check
        _
      $region62: #{tpu_custom_call.1} parent=5 // pred_check_branch
        %430 = sbr.rel (%p427) target = $region64
      $region63: #{tpu_custom_call.1} parent=5 // pred_region
        %s431 = ssub.s32 %s20, 1
        %p432 = scmp.lt.s32.totalorder %s25, 1
        %s433 = scalar_select %p432, %s25, 1
        %s434 = smul.addr %s433, 2
        %s435 = smul.addr %s434, 8
        %s436 = scalar_lea.vmem %s0, %s435
        %p437 = pneg %p46
        %p438 = pneg %p43
        %p439 = scmp.lt.s32.totalorder %s25, 1
        %s440 = scalar_select %p439, %s25, 1
        %s441 = smul.addr %s440, 6
        %s442 = smul.addr %s441, 8
        %s443 = scalar_lea.vmem %s1, %s442
        %p444 = pneg %p72
        %p445 = pneg %p69
        %p446 = scmp.lt.s32.totalorder %s25, 1
        %s447 = scalar_select %p446, %s25, 1
        %s448 = scalar_lea.vmem %s2, %s447
        %p449 = pneg %p98
        %p450 = pneg %p95
        %p451 = scmp.lt.s32.totalorder %s25, 1
        %s452 = scalar_select %p451, %s25, 1
        %s453 = scalar_lea.vmem %s3, %s452
        %p454 = pneg %p124
        %p455 = pneg %p121
        %p456 = scmp.lt.s32.totalorder %s25, 1
        %s457 = scalar_select %p456, %s25, 1
        %s458 = smul.addr %s457, 6
        %s459 = smul.addr %s458, 8
        %s460 = scalar_lea.vmem %s4, %s459
        %p461 = pneg %p150
        %p462 = pneg %p147
        %p463 = scmp.lt.s32.totalorder %s25, 1
        %s464 = scalar_select %p463, %s25, 1
        %s465 = smul.addr %s464, 6
        %s466 = smul.addr %s465, 8
        %s467 = scalar_lea.vmem %s5, %s466
        %p468 = pneg %p176
        %p469 = pneg %p173
        %p470 = pneg %p197
        %p471 = pneg %p194
        %p472 = scmp.lt.s32.totalorder %s25, 1
        %s473 = scalar_select %p472, %s25, 1
        %s474 = smul.addr %s473, 4
        %s475 = smul.addr %s474, 4
        %s476 = scalar_lea.vmem %s7, %s475
        %p477 = pneg %p223
        %p478 = pneg %p220
        %p479 = scmp.lt.s32.totalorder %s25, 1
        %s480 = scalar_select %p479, %s25, 1
        %s481 = smul.addr %s480, 4
        %s482 = smul.addr %s481, 4
        %s483 = scalar_lea.vmem %s8, %s482
        %p484 = pneg %p249
        %p485 = pneg %p246
        %p486 = scmp.lt.s32.totalorder %s25, 1
        %s487 = scalar_select %p486, %s25, 1
        %s488 = smul.addr %s487, 4
        %s489 = smul.addr %s488, 4
        %s490 = scalar_lea.vmem %s9, %s489
        %p491 = pneg %p275
        %p492 = pneg %p272
        %p493 = scmp.lt.s32.totalorder %s25, 1
        %s494 = scalar_select %p493, %s25, 1
        %s495 = smul.addr %s494, 4
        %s496 = smul.addr %s495, 4
        %s497 = scalar_lea.vmem %s10, %s496
        %p498 = pneg %p301
        %p499 = pneg %p298
        %p500 = pneg %p327
        %p501 = pneg %p324
        %s502 = sand.u32 %s314, 1
        %s503 = scalar_lea.sflag [#allocation3], %s502
        %s504 = sand.u32 %s314, 1
        %s505 = smul.addr %s504, 16
        %s506 = scalar_lea.vmem [#allocation2], %s505
        %p507 = scmp.lt.s32.totalorder %s25, 1
        %s508 = scalar_select %p507, %s25, 1
        %s509 = smul.addr %s508, 2
        %s510 = smul.addr %s509, 8
        %s511 = scalar_lea.vmem %s0, %s510
        %p512 = scmp.lt.s32.totalorder %s25, 1
        %s513 = scalar_select %p512, %s25, 1
        %s514 = smul.addr %s513, 6
        %s515 = smul.addr %s514, 8
        %s516 = scalar_lea.vmem %s1, %s515
        %p517 = scmp.lt.s32.totalorder %s25, 1
        %s518 = scalar_select %p517, %s25, 1
        %s519 = scalar_lea.vmem %s2, %s518
        %p520 = scmp.lt.s32.totalorder %s25, 1
        %s521 = scalar_select %p520, %s25, 1
        %s522 = scalar_lea.vmem %s3, %s521
        %p523 = scmp.lt.s32.totalorder %s25, 1
        %s524 = scalar_select %p523, %s25, 1
        %s525 = smul.addr %s524, 6
        %s526 = smul.addr %s525, 8
        %s527 = scalar_lea.vmem %s4, %s526
        %p528 = scmp.lt.s32.totalorder %s25, 1
        %s529 = scalar_select %p528, %s25, 1
        %s530 = smul.addr %s529, 6
        %s531 = smul.addr %s530, 8
        %s532 = scalar_lea.vmem %s5, %s531
        %p533 = scmp.lt.s32.totalorder %s25, 1
        %s534 = scalar_select %p533, %s25, 1
        %s535 = smul.addr %s534, 4
        %s536 = smul.addr %s535, 4
        %s537 = scalar_lea.vmem %s7, %s536
        %p538 = scmp.lt.s32.totalorder %s25, 1
        %s539 = scalar_select %p538, %s25, 1
        %s540 = smul.addr %s539, 4
        %s541 = smul.addr %s540, 4
        %s542 = scalar_lea.vmem %s8, %s541
        %p543 = scmp.lt.s32.totalorder %s25, 1
        %s544 = scalar_select %p543, %s25, 1
        %s545 = smul.addr %s544, 4
        %s546 = smul.addr %s545, 4
        %s547 = scalar_lea.vmem %s9, %s546
        %p548 = scmp.lt.s32.totalorder %s25, 1
        %s549 = scalar_select %p548, %s25, 1
        %s550 = smul.addr %s549, 4
        %s551 = smul.addr %s550, 4
        %s552 = scalar_lea.vmem %s10, %s551
        %v554 = vld [vmem:[%s511] sm:$0xff]
        %v555 = vld [vmem:[%s511 + $0x8] sm:$0xff]
        %v556 = vld [vmem:[%s516] sm:$0xff]
        %v557 = vld [vmem:[%s516 + $0x8] sm:$0xff]
        %v558 = vld [vmem:[%s516 + $0x10] sm:$0xff]
        %v559 = vld [vmem:[%s516 + $0x18] sm:$0xff]
        %v560 = vld [vmem:[%s516 + $0x20] sm:$0xff]
        %v561 = vld [vmem:[%s516 + $0x28] sm:$0xff]
        %v562 = vld [vmem:[%s519] sm:$0x1]
        %v563 = vld [vmem:[%s522] sm:$0x1]
        %vm564 = vcmask 261120
        %v565 = vsel %vm564, %v554, 0.0
        %566 = vadd.xlane.f32.xlu0 %v565
        %v567 = vpop.xlane.xlu0 %566
        %v568 = vsel %vm564, %v555, 0.0
        %569 = vadd.xlane.f32.xlu0 %v568
        %v570 = vpop.xlane.xlu0 %569
        %v571 = vrcp.pop 32.0
        %v572 = vmul.f32 %v567, %v571
        %v573 = vmul.f32 %v570, %v571
        %v574 = vsub.f32 %v554, %v572
        %v575 = vsub.f32 %v555, %v573
        %v576 = vmul.f32 %v574, %v574
        %v577 = vmul.f32 %v575, %v575
        %v578 = vsel %vm564, %v576, 0.0
        %579 = vadd.xlane.f32.xlu0 %v578
        %v580 = vpop.xlane.xlu0 %579
        %v581 = vsel %vm564, %v577, 0.0
        %582 = vadd.xlane.f32.xlu0 %v581
        %v583 = vpop.xlane.xlu0 %582
        %v584 = vmul.f32 %v580, %v571
        %v585 = vmul.f32 %v583, %v571
        %v586 = vadd.f32 %v584, 1e-05
        %v587 = vadd.f32 %v585, 1e-05
        %v588 = vrsqrt.pop %v586
        %v589 = vrsqrt.pop %v587
        %v590 = vmul.f32 %v574, %v588
        %v591 = vmul.f32 %v575, %v589
        %v593 = vlaneseq
        %v594 = vshrl.u32 %v593, 7
        %v595 = vsub.s32 0, %v594
        %v596 = vrot.slane %v562, %v595
        %v598 = vmul.f32 %v590, %v596
        %v599 = vmul.f32 %v591, %v596
        %v601 = vlaneseq
        %v602 = vshrl.u32 %v601, 7
        %v603 = vsub.s32 0, %v602
        %v604 = vrot.slane %v563, %v603
        %v606 = vadd.f32 %v598, %v604
        %v607 = vadd.f32 %v599, %v604
        %v608 = vld [vmem:[%s527] sm:$0xff]
        %v609 = vld [vmem:[%s527 + $0x8] sm:$0xff]
        %v610 = vld [vmem:[%s527 + $0x10] sm:$0xff]
        %v611 = vld [vmem:[%s527 + $0x18] sm:$0xff]
        %v612 = vld [vmem:[%s527 + $0x20] sm:$0xff]
        %v613 = vld [vmem:[%s527 + $0x28] sm:$0xff]
        %v614 = vld [vmem:[%s532] sm:$0xff]
        %v615 = vld [vmem:[%s532 + $0x8] sm:$0xff]
        %v616 = vld [vmem:[%s532 + $0x10] sm:$0xff]
        %v617 = vld [vmem:[%s532 + $0x18] sm:$0xff]
        %v618 = vld [vmem:[%s532 + $0x20] sm:$0xff]
        %v619 = vld [vmem:[%s532 + $0x28] sm:$0xff]
        %v620 = vsel %vm564, %v556, 0.0
        %621 = vadd.xlane.f32.xlu0 %v620
        %v622 = vpop.xlane.xlu0 %621
        %v623 = vsel %vm564, %v557, 0.0
        %624 = vadd.xlane.f32.xlu0 %v623
        %v625 = vpop.xlane.xlu0 %624
        %v626 = vsel %vm564, %v558, 0.0
        %627 = vadd.xlane.f32.xlu0 %v626
        %v628 = vpop.xlane.xlu0 %627
        %v629 = vsel %vm564, %v559, 0.0
        %630 = vadd.xlane.f32.xlu0 %v629
        %v631 = vpop.xlane.xlu0 %630
        %v632 = vsel %vm564, %v560, 0.0
        %633 = vadd.xlane.f32.xlu0 %v632
        %v634 = vpop.xlane.xlu0 %633
        %v635 = vsel %vm564, %v561, 0.0
        %636 = vadd.xlane.f32.xlu0 %v635
        %v637 = vpop.xlane.xlu0 %636
        %v638 = vmul.f32 %v622, %v571
        %v639 = vmul.f32 %v625, %v571
        %v640 = vmul.f32 %v628, %v571
        %v641 = vmul.f32 %v631, %v571
        %v642 = vmul.f32 %v634, %v571
        %v643 = vmul.f32 %v637, %v571
        %v644 = vsub.f32 %v556, %v638
        %v645 = vsub.f32 %v557, %v639
        %v646 = vsub.f32 %v558, %v640
        %v647 = vsub.f32 %v559, %v641
        %v648 = vsub.f32 %v560, %v642
        %v649 = vsub.f32 %v561, %v643
        %v650 = vmul.f32 %v644, %v644
        %v651 = vmul.f32 %v645, %v645
        %v652 = vmul.f32 %v646, %v646
        %v653 = vmul.f32 %v647, %v647
        %v654 = vmul.f32 %v648, %v648
        %v655 = vmul.f32 %v649, %v649
        %v656 = vsel %vm564, %v650, 0.0
        %657 = vadd.xlane.f32.xlu0 %v656
        %v658 = vpop.xlane.xlu0 %657
        %v659 = vsel %vm564, %v651, 0.0
        %660 = vadd.xlane.f32.xlu0 %v659
        %v661 = vpop.xlane.xlu0 %660
        %v662 = vsel %vm564, %v652, 0.0
        %663 = vadd.xlane.f32.xlu0 %v662
        %v664 = vpop.xlane.xlu0 %663
        %v665 = vsel %vm564, %v653, 0.0
        %666 = vadd.xlane.f32.xlu0 %v665
        %v667 = vpop.xlane.xlu0 %666
        %v668 = vsel %vm564, %v654, 0.0
        %669 = vadd.xlane.f32.xlu0 %v668
        %v670 = vpop.xlane.xlu0 %669
        %v671 = vsel %vm564, %v655, 0.0
        %672 = vadd.xlane.f32.xlu0 %v671
        %v673 = vpop.xlane.xlu0 %672
        %v674 = vmul.f32 %v658, %v571
        %v675 = vmul.f32 %v661, %v571
        %v676 = vmul.f32 %v664, %v571
        %v677 = vmul.f32 %v667, %v571
        %v678 = vmul.f32 %v670, %v571
        %v679 = vmul.f32 %v673, %v571
        %v680 = vadd.f32 %v674, 1e-05
        %v681 = vadd.f32 %v675, 1e-05
        %v682 = vadd.f32 %v676, 1e-05
        %v683 = vadd.f32 %v677, 1e-05
        %v684 = vadd.f32 %v678, 1e-05
        %v685 = vadd.f32 %v679, 1e-05
        %v686 = vrsqrt.pop %v680
        %v687 = vrsqrt.pop %v681
        %v688 = vrsqrt.pop %v682
        %v689 = vrsqrt.pop %v683
        %v690 = vrsqrt.pop %v684
        %v691 = vrsqrt.pop %v685
        %v692 = vmul.f32 %v644, %v686
        %v693 = vmul.f32 %v645, %v687
        %v694 = vmul.f32 %v646, %v688
        %v695 = vmul.f32 %v647, %v689
        %v696 = vmul.f32 %v648, %v690
        %v697 = vmul.f32 %v649, %v691
        %v698 = vmul.f32 %v692, %v608
        %v699 = vmul.f32 %v693, %v609
        %v700 = vmul.f32 %v694, %v610
        %v701 = vmul.f32 %v695, %v611
        %v702 = vmul.f32 %v696, %v612
        %v703 = vmul.f32 %v697, %v613
        %v704 = vadd.f32 %v698, %v614
        %v705 = vadd.f32 %v699, %v615
        %v706 = vadd.f32 %v700, %v616
        %v707 = vadd.f32 %v701, %v617
        %v708 = vadd.f32 %v702, %v618
        %v709 = vadd.f32 %v703, %v619
        %v710 = vpack.c.bf16 %v607, %v606
        %v711 = vpack.c.bf16 %v705, %v704
        %v712 = vpack.c.bf16 %v707, %v706
        %v713 = vpack.c.bf16 %v709, %v708
        %v714 = vld [vmem:[%s537] sm:$0xf]
        %v715 = vld [vmem:[%s537 + $0x4] sm:$0xf]
        %v716 = vld [vmem:[%s537 + $0x8] sm:$0xf]
        %v717 = vld [vmem:[%s537 + $0xc] sm:$0xf]
        %v722 = vunpack.c.l.b16 %v714
        %v723 = vunpack.c.l.b16 %v715
        %v724 = vunpack.c.l.b16 %v716
        %v725 = vunpack.c.l.b16 %v717
        %v726 = vpack.c.b16 %v723, %v722
        %v727 = vpack.c.b16 %v725, %v724
        %v731 = vsel %vm564, %v710, 0
        %733 = vmatprep.subr.bf16.mxu0 0
        %734 = vmatpush1.bf16.msra.mxu0 %v726
        %735 = vmatprep.subr.bf16.mxu0 0
        %736 = vmatpush1.bf16.msra.mxu0 %v727
        %737 = vmatprep.subr.bf16.mxu0 0
        %738 = vmatpush1.bf16.msra.mxu0 0
        %739 = vmatprep.subr.bf16.mxu0 0
        %740 = vmatpush1.bf16.msra.mxu0 0
        %741 = vmatprep.subr.bf16.mxu0 0
        %742 = vmatpush1.bf16.msra.mxu0 0
        %743 = vmatprep.subr.bf16.mxu0 0
        %744 = vmatpush1.bf16.msra.mxu0 0
        %745 = vmatprep.subr.bf16.mxu0 0
        %746 = vmatpush1.bf16.msra.mxu0 0
        %747 = vmatprep.subr.bf16.mxu0 0
        %748 = vmatpush1.bf16.msra.mxu0 0
        %749 = vmatprep.subr.bf16.mxu0 0
        %750 = vmatpush1.bf16.msra.mxu0 0
        %751 = vmatprep.subr.bf16.mxu0 0
        %752 = vmatpush1.bf16.msra.mxu0 0
        %753 = vmatprep.subr.bf16.mxu0 0
        %754 = vmatpush1.bf16.msra.mxu0 0
        %755 = vmatprep.subr.bf16.mxu0 0
        %756 = vmatpush1.bf16.msra.mxu0 0
        %757 = vmatprep.subr.bf16.mxu0 0
        %758 = vmatpush1.bf16.msra.mxu0 0
        %759 = vmatprep.subr.bf16.mxu0 0
        %760 = vmatpush1.bf16.msra.mxu0 0
        %761 = vmatprep.subr.bf16.mxu0 0
        %762 = vmatpush1.bf16.msra.mxu0 0
        %763 = vmatprep.subr.bf16.mxu0 0
        %764 = vmatpush1.bf16.msra.mxu0 0
        %765 = vmatprep.mubr.bf16.mxu0 0
        %766 = vmatmul.mubr.bf16.gmra.mrb[0].mxu0 %v731
        %v767 = vpop.f32.mrb[0].mxu0
        %v768 = vadd.f32 0.0, %v767
        %v769 = vpop.f32.mrb[0].mxu0
        %v770 = vpop.f32.mrb[0].mxu0
        %v771 = vadd.f32 0.0, %v770
        %v772 = vpop.f32.mrb[0].mxu0
        %773 = vdwg.mxu0
        %v774 = vld [vmem:[%s542] sm:$0xf]
        %v775 = vld [vmem:[%s542 + $0x4] sm:$0xf]
        %v776 = vld [vmem:[%s542 + $0x8] sm:$0xf]
        %v777 = vld [vmem:[%s542 + $0xc] sm:$0xf]
        %v782 = vunpack.c.l.b16 %v774
        %v783 = vunpack.c.l.b16 %v775
        %v784 = vunpack.c.l.b16 %v776
        %v785 = vunpack.c.l.b16 %v777
        %v786 = vpack.c.b16 %v783, %v782
        %v787 = vpack.c.b16 %v785, %v784
        %v791 = vsel %vm564, %v711, 0
        %v794 = vsel %vm564, %v712, 0
        %v797 = vsel %vm564, %v713, 0
        %799 = vmatprep.subr.bf16.mxu0 0
        %800 = vmatpush1.bf16.msra.mxu0 %v786
        %801 = vmatprep.subr.bf16.mxu0 0
        %802 = vmatpush1.bf16.msra.mxu0 %v787
        %803 = vmatprep.subr.bf16.mxu0 0
        %804 = vmatpush1.bf16.msra.mxu0 0
        %805 = vmatprep.subr.bf16.mxu0 0
        %806 = vmatpush1.bf16.msra.mxu0 0
        %807 = vmatprep.subr.bf16.mxu0 0
        %808 = vmatpush1.bf16.msra.mxu0 0
        %809 = vmatprep.subr.bf16.mxu0 0
        %810 = vmatpush1.bf16.msra.mxu0 0
        %811 = vmatprep.subr.bf16.mxu0 0
        %812 = vmatpush1.bf16.msra.mxu0 0
        %813 = vmatprep.subr.bf16.mxu0 0
        %814 = vmatpush1.bf16.msra.mxu0 0
        %815 = vmatprep.subr.bf16.mxu0 0
        %816 = vmatpush1.bf16.msra.mxu0 0
        %817 = vmatprep.subr.bf16.mxu0 0
        %818 = vmatpush1.bf16.msra.mxu0 0
        %819 = vmatprep.subr.bf16.mxu0 0
        %820 = vmatpush1.bf16.msra.mxu0 0
        %821 = vmatprep.subr.bf16.mxu0 0
        %822 = vmatpush1.bf16.msra.mxu0 0
        %823 = vmatprep.subr.bf16.mxu0 0
        %824 = vmatpush1.bf16.msra.mxu0 0
        %825 = vmatprep.subr.bf16.mxu0 0
        %826 = vmatpush1.bf16.msra.mxu0 0
        %827 = vmatprep.subr.bf16.mxu0 0
        %828 = vmatpush1.bf16.msra.mxu0 0
        %829 = vmatprep.subr.bf16.mxu0 0
        %830 = vmatpush1.bf16.msra.mxu0 0
        %831 = vmatprep.mubr.bf16.mxu0 0
        %832 = vmatmul.mubr.bf16.gmra.mrb[0].mxu0 %v791
        %v833 = vpop.f32.mrb[0].mxu0
        %v834 = vadd.f32 0.0, %v833
        %v835 = vpop.f32.mrb[0].mxu0
        %v836 = vpop.f32.mrb[0].mxu0
        %v837 = vadd.f32 0.0, %v836
        %v838 = vpop.f32.mrb[0].mxu0
        %839 = vmatprep.mubr.bf16.mxu0 0
        %840 = vmatmul.mubr.bf16.gmra.mrb[0].mxu0 %v794
        %v841 = vpop.f32.mrb[0].mxu0
        %v842 = vadd.f32 0.0, %v841
        %v843 = vpop.f32.mrb[0].mxu0
        %v844 = vpop.f32.mrb[0].mxu0
        %v845 = vadd.f32 0.0, %v844
        %v846 = vpop.f32.mrb[0].mxu0
        %847 = vmatprep.mubr.bf16.mxu0 0
        %848 = vmatmul.mubr.bf16.gmra.mrb[0].mxu0 %v797
        %v849 = vpop.f32.mrb[0].mxu0
        %v850 = vadd.f32 0.0, %v849
        %v851 = vpop.f32.mrb[0].mxu0
        %v852 = vpop.f32.mrb[0].mxu0
        %v853 = vadd.f32 0.0, %v852
        %v854 = vpop.f32.mrb[0].mxu0
        %855 = vdwg.mxu0
        %v856 = vld [vmem:[%s547] sm:$0xf]
        %v857 = vld [vmem:[%s547 + $0x4] sm:$0xf]
        %v858 = vld [vmem:[%s547 + $0x8] sm:$0xf]
        %v859 = vld [vmem:[%s547 + $0xc] sm:$0xf]
        %v864 = vunpack.c.l.b16 %v856
        %v865 = vunpack.c.l.b16 %v857
        %v866 = vunpack.c.l.b16 %v858
        %v867 = vunpack.c.l.b16 %v859
        %v868 = vpack.c.b16 %v865, %v864
        %v869 = vpack.c.b16 %v867, %v866
        %872 = vmatprep.subr.bf16.mxu0 0
        %873 = vmatpush1.bf16.msra.mxu0 %v868
        %874 = vmatprep.subr.bf16.mxu0 0
        %875 = vmatpush1.bf16.msra.mxu0 %v869
        %876 = vmatprep.subr.bf16.mxu0 0
        %877 = vmatpush1.bf16.msra.mxu0 0
        %878 = vmatprep.subr.bf16.mxu0 0
        %879 = vmatpush1.bf16.msra.mxu0 0
        %880 = vmatprep.subr.bf16.mxu0 0
        %881 = vmatpush1.bf16.msra.mxu0 0
        %882 = vmatprep.subr.bf16.mxu0 0
        %883 = vmatpush1.bf16.msra.mxu0 0
        %884 = vmatprep.subr.bf16.mxu0 0
        %885 = vmatpush1.bf16.msra.mxu0 0
        %886 = vmatprep.subr.bf16.mxu0 0
        %887 = vmatpush1.bf16.msra.mxu0 0
        %888 = vmatprep.subr.bf16.mxu0 0
        %889 = vmatpush1.bf16.msra.mxu0 0
        %890 = vmatprep.subr.bf16.mxu0 0
        %891 = vmatpush1.bf16.msra.mxu0 0
        %892 = vmatprep.subr.bf16.mxu0 0
        %893 = vmatpush1.bf16.msra.mxu0 0
        %894 = vmatprep.subr.bf16.mxu0 0
        %895 = vmatpush1.bf16.msra.mxu0 0
        %896 = vmatprep.subr.bf16.mxu0 0
        %897 = vmatpush1.bf16.msra.mxu0 0
        %898 = vmatprep.subr.bf16.mxu0 0
        %899 = vmatpush1.bf16.msra.mxu0 0
        %900 = vmatprep.subr.bf16.mxu0 0
        %901 = vmatpush1.bf16.msra.mxu0 0
        %902 = vmatprep.subr.bf16.mxu0 0
        %903 = vmatpush1.bf16.msra.mxu0 0
        %904 = vmatprep.mubr.bf16.mxu0 0
        %905 = vmatmul.mubr.bf16.gmra.mrb[0].mxu0 %v791
        %v906 = vpop.f32.mrb[0].mxu0
        %v907 = vadd.f32 0.0, %v906
        %v908 = vpop.f32.mrb[0].mxu0
        %v909 = vpop.f32.mrb[0].mxu0
        %v910 = vadd.f32 0.0, %v909
        %v911 = vpop.f32.mrb[0].mxu0
        %912 = vmatprep.mubr.bf16.mxu0 0
        %913 = vmatmul.mubr.bf16.gmra.mrb[0].mxu0 %v794
        %v914 = vpop.f32.mrb[0].mxu0
        %v915 = vadd.f32 0.0, %v914
        %v916 = vpop.f32.mrb[0].mxu0
        %v917 = vpop.f32.mrb[0].mxu0
        %v918 = vadd.f32 0.0, %v917
        %v919 = vpop.f32.mrb[0].mxu0
        %920 = vmatprep.mubr.bf16.mxu0 0
        %921 = vmatmul.mubr.bf16.gmra.mrb[0].mxu0 %v797
        %v922 = vpop.f32.mrb[0].mxu0
        %v923 = vadd.f32 0.0, %v922
        %v924 = vpop.f32.mrb[0].mxu0
        %v925 = vpop.f32.mrb[0].mxu0
        %v926 = vadd.f32 0.0, %v925
        %v927 = vpop.f32.mrb[0].mxu0
        %928 = vdwg.mxu0
        %v929 = vpack.c.bf16 %v768, %v768
        %v930 = vpack.c.bf16 %v771, %v771
        %v931 = vld [vmem:[%s6] sm:$0xf]
        %v932 = vld [vmem:[%s6 + $0x4] sm:$0xf]
        %v933 = vld [vmem:[%s6 + $0x8] sm:$0xf]
        %v934 = vld [vmem:[%s6 + $0xc] sm:$0xf]
        %v935 = vld [vmem:[%s6 + $0x10] sm:$0xf]
        %v936 = vld [vmem:[%s6 + $0x14] sm:$0xf]
        %v937 = vld [vmem:[%s6 + $0x18] sm:$0xf]
        %v938 = vld [vmem:[%s6 + $0x1c] sm:$0xf]
        %v939 = vld [vmem:[%s6 + $0x20] sm:$0xf]
        %v940 = vld [vmem:[%s6 + $0x24] sm:$0xf]
        %v941 = vld [vmem:[%s6 + $0x28] sm:$0xf]
        %v942 = vld [vmem:[%s6 + $0x2c] sm:$0xf]
        %v943 = vpack.c.bf16 %v837, %v834
        %v944 = vpack.c.bf16 %v834, %v842
        %v945 = vpack.c.bf16 %v842, %v837
        %v946 = vpack.c.bf16 %v850, %v845
        %v947 = vpack.c.bf16 %v845, %v853
        %v948 = vpack.c.bf16 %v853, %v850
        %v961 = vunpack.c.l.b16 %v931
        %v962 = vunpack.c.l.b16 %v932
        %v963 = vunpack.c.l.b16 %v933
        %v964 = vunpack.c.l.b16 %v934
        %v965 = vunpack.c.l.b16 %v935
        %v966 = vunpack.c.l.b16 %v936
        %v967 = vunpack.c.l.b16 %v937
        %v968 = vunpack.c.l.b16 %v938
        %v969 = vunpack.c.l.b16 %v939
        %v970 = vunpack.c.l.b16 %v940
        %v971 = vunpack.c.l.b16 %v941
        %v972 = vunpack.c.l.b16 %v942
        %v973 = vpack.c.b16 %v962, %v961
        %v974 = vpack.c.b16 %v964, %v963
        %v975 = vpack.c.b16 %v966, %v965
        %v976 = vpack.c.b16 %v968, %v967
        %v977 = vpack.c.b16 %v970, %v969
        %v978 = vpack.c.b16 %v972, %v971
        %v985 = vmul.bf16 %v943, %v973
        %v986 = vmul.bf16 %v944, %v974
        %v987 = vmul.bf16 %v945, %v975
        %v988 = vmul.bf16 %v943, %v976
        %v989 = vmul.bf16 %v944, %v977
        %v990 = vmul.bf16 %v945, %v978
        %v991 = vmul.bf16 %v946, %v973
        %v992 = vmul.bf16 %v947, %v974
        %v993 = vmul.bf16 %v948, %v975
        %v994 = vmul.bf16 %v946, %v976
        %v995 = vmul.bf16 %v947, %v977
        %v996 = vmul.bf16 %v948, %v978
        %v997 = vpack.c.bf16 %v910, %v907
        %v998 = vpack.c.bf16 %v907, %v915
        %v999 = vpack.c.bf16 %v915, %v910
        %v1000 = vpack.c.bf16 %v923, %v918
        %v1001 = vpack.c.bf16 %v918, %v926
        %v1002 = vpack.c.bf16 %v926, %v923
        %v1003 = vmul.bf16 %v997, %v973
        %v1004 = vmul.bf16 %v998, %v974
        %v1005 = vmul.bf16 %v999, %v975
        %v1006 = vmul.bf16 %v997, %v976
        %v1007 = vmul.bf16 %v998, %v977
        %v1008 = vmul.bf16 %v999, %v978
        %v1009 = vmul.bf16 %v1000, %v973
        %v1010 = vmul.bf16 %v1001, %v974
        %v1011 = vmul.bf16 %v1002, %v975
        %v1012 = vmul.bf16 %v1000, %v976
        %v1013 = vmul.bf16 %v1001, %v977
        %v1014 = vmul.bf16 %v1002, %v978
        %v1016 = vsel %vm564, %v929, 0
        %v1019 = vsel %vm564, %v985, 0
        %v1022 = vsel %vm564, %v986, 0
        %v1025 = vsel %vm564, %v987, 0
        %v1028 = vsel %vm564, %v988, 0
        %v1031 = vsel %vm564, %v989, 0
        %v1034 = vsel %vm564, %v990, 0
        %1036 = vmatprep.subr.bf16.mxu0 0
        %1037 = vmatpush1.bf16.xpose.msra.mxu0 %v1019
        %1038 = vmatprep.subr.bf16.mxu0 0
        %1039 = vmatpush1.bf16.xpose.msra.mxu0 %v1022
        %1040 = vmatprep.subr.bf16.mxu0 0
        %1041 = vmatpush1.bf16.xpose.msra.mxu0 %v1025
        %1042 = vmatprep.subr.bf16.mxu0 0
        %1043 = vmatpush1.bf16.xpose.msra.mxu0 %v1028
        %1044 = vmatprep.subr.bf16.mxu0 0
        %1045 = vmatpush1.bf16.xpose.msra.mxu0 %v1031
        %1046 = vmatprep.subr.bf16.mxu0 0
        %1047 = vmatpush1.bf16.xpose.msra.mxu0 %v1034
        %1048 = vmatprep.subr.bf16.mxu0 0
        %1049 = vmatpush1.bf16.xpose.msra.mxu0 0
        %1050 = vmatprep.subr.bf16.mxu0 0
        %1051 = vmatpush1.bf16.xpose.msra.mxu0 0
        %1052 = vmatprep.subr.bf16.mxu0 0
        %1053 = vmatpush1.bf16.xpose.msra.mxu0 0
        %1054 = vmatprep.subr.bf16.mxu0 0
        %1055 = vmatpush1.bf16.xpose.msra.mxu0 0
        %1056 = vmatprep.subr.bf16.mxu0 0
        %1057 = vmatpush1.bf16.xpose.msra.mxu0 0
        %1058 = vmatprep.subr.bf16.mxu0 0
        %1059 = vmatpush1.bf16.xpose.msra.mxu0 0
        %1060 = vmatprep.subr.bf16.mxu0 0
        %1061 = vmatpush1.bf16.xpose.msra.mxu0 0
        %1062 = vmatprep.subr.bf16.mxu0 0
        %1063 = vmatpush1.bf16.xpose.msra.mxu0 0
        %1064 = vmatprep.subr.bf16.mxu0 0
        %1065 = vmatpush1.bf16.xpose.msra.mxu0 0
        %1066 = vmatprep.subr.bf16.mxu0 0
        %1067 = vmatpush1.bf16.xpose.msra.mxu0 0
        %1068 = vmatprep.mubr.bf16.mxu0 0
        %1069 = vmatmul.mubr.bf16.gmra.mrb[0].mxu0 %v1016
        %v1070 = vpop.f32.mrb[0].mxu0
        %v1071 = vadd.f32 0.0, %v1070
        %v1072 = vpop.f32.mrb[0].mxu0
        %v1073 = vpop.f32.mrb[0].mxu0
        %v1074 = vpop.f32.mrb[0].mxu0
        %1075 = vdwg.mxu0
        %v1077 = vsel %vm564, %v930, 0
        %v1080 = vsel %vm564, %v991, 0
        %v1083 = vsel %vm564, %v992, 0
        %v1086 = vsel %vm564, %v993, 0
        %v1089 = vsel %vm564, %v994, 0
        %v1092 = vsel %vm564, %v995, 0
        %v1095 = vsel %vm564, %v996, 0
        %1097 = vmatprep.subr.bf16.mxu0 0
        %1098 = vmatpush1.bf16.xpose.msra.mxu0 %v1080
        %1099 = vmatprep.subr.bf16.mxu0 0
        %1100 = vmatpush1.bf16.xpose.msra.mxu0 %v1083
        %1101 = vmatprep.subr.bf16.mxu0 0
        %1102 = vmatpush1.bf16.xpose.msra.mxu0 %v1086
        %1103 = vmatprep.subr.bf16.mxu0 0
        %1104 = vmatpush1.bf16.xpose.msra.mxu0 %v1089
        %1105 = vmatprep.subr.bf16.mxu0 0
        %1106 = vmatpush1.bf16.xpose.msra.mxu0 %v1092
        %1107 = vmatprep.subr.bf16.mxu0 0
        %1108 = vmatpush1.bf16.xpose.msra.mxu0 %v1095
        %1109 = vmatprep.subr.bf16.mxu0 0
        %1110 = vmatpush1.bf16.xpose.msra.mxu0 0
        %1111 = vmatprep.subr.bf16.mxu0 0
        %1112 = vmatpush1.bf16.xpose.msra.mxu0 0
        %1113 = vmatprep.subr.bf16.mxu0 0
        %1114 = vmatpush1.bf16.xpose.msra.mxu0 0
        %1115 = vmatprep.subr.bf16.mxu0 0
        %1116 = vmatpush1.bf16.xpose.msra.mxu0 0
        %1117 = vmatprep.subr.bf16.mxu0 0
        %1118 = vmatpush1.bf16.xpose.msra.mxu0 0
        %1119 = vmatprep.subr.bf16.mxu0 0
        %1120 = vmatpush1.bf16.xpose.msra.mxu0 0
        %1121 = vmatprep.subr.bf16.mxu0 0
        %1122 = vmatpush1.bf16.xpose.msra.mxu0 0
        %1123 = vmatprep.subr.bf16.mxu0 0
        %1124 = vmatpush1.bf16.xpose.msra.mxu0 0
        %1125 = vmatprep.subr.bf16.mxu0 0
        %1126 = vmatpush1.bf16.xpose.msra.mxu0 0
        %1127 = vmatprep.subr.bf16.mxu0 0
        %1128 = vmatpush1.bf16.xpose.msra.mxu0 0
        %1129 = vmatprep.mubr.bf16.mxu0 0
        %1130 = vmatmul.mubr.bf16.gmra.mrb[0].mxu0 %v1077
        %v1131 = vpop.f32.mrb[0].mxu0
        %v1132 = vadd.f32 0.0, %v1131
        %v1133 = vpop.f32.mrb[0].mxu0
        %v1134 = vpop.f32.mrb[0].mxu0
        %v1135 = vpop.f32.mrb[0].mxu0
        %1136 = vdwg.mxu0
        %vm1137 = vcmask 785408
        %v1138 = vsel %vm1137, %v1071, -inf
        %1139 = vmax.xlane.f32.xlu0 %v1138
        %v1140 = vpop.xlane.xlu0 %1139
        %v1141 = vsel %vm1137, %v1132, -inf
        %1142 = vmax.xlane.f32.xlu0 %v1141
        %v1143 = vpop.xlane.xlu0 %1142
        %v1144 = vsub.f32 %v1071, %v1140
        %v1145 = vsub.f32 %v1132, %v1143
        %v1146 = vmul.f32 %v1144, 1.442695
        %v1147 = vpow.pop %v1146
        %v1148 = vmul.f32 %v1145, 1.442695
        %v1149 = vpow.pop %v1148
        %v1150 = vpack.c.bf16 %v1147, %v1147
        %v1151 = vpack.c.bf16 %v1149, %v1149
        %v1153 = vsel %vm1137, %v1150, 0
        %1155 = vmatprep.subr.bf16.mxu0 0
        %1156 = vmatpush1.bf16.msra.mxu0 %v1003
        %1157 = vmatprep.subr.bf16.mxu0 0
        %1158 = vmatpush1.bf16.msra.mxu0 %v1004
        %1159 = vmatprep.subr.bf16.mxu0 0
        %1160 = vmatpush1.bf16.msra.mxu0 %v1005
        %1161 = vmatprep.subr.bf16.mxu0 0
        %1162 = vmatpush1.bf16.msra.mxu0 %v1006
        %1163 = vmatprep.subr.bf16.mxu0 0
        %1164 = vmatpush1.bf16.msra.mxu0 %v1007
        %1165 = vmatprep.subr.bf16.mxu0 0
        %1166 = vmatpush1.bf16.msra.mxu0 %v1008
        %1167 = vmatprep.subr.bf16.mxu0 0
        %1168 = vmatpush1.bf16.msra.mxu0 0
        %1169 = vmatprep.subr.bf16.mxu0 0
        %1170 = vmatpush1.bf16.msra.mxu0 0
        %1171 = vmatprep.subr.bf16.mxu0 0
        %1172 = vmatpush1.bf16.msra.mxu0 0
        %1173 = vmatprep.subr.bf16.mxu0 0
        %1174 = vmatpush1.bf16.msra.mxu0 0
        %1175 = vmatprep.subr.bf16.mxu0 0
        %1176 = vmatpush1.bf16.msra.mxu0 0
        %1177 = vmatprep.subr.bf16.mxu0 0
        %1178 = vmatpush1.bf16.msra.mxu0 0
        %1179 = vmatprep.subr.bf16.mxu0 0
        %1180 = vmatpush1.bf16.msra.mxu0 0
        %1181 = vmatprep.subr.bf16.mxu0 0
        %1182 = vmatpush1.bf16.msra.mxu0 0
        %1183 = vmatprep.subr.bf16.mxu0 0
        %1184 = vmatpush1.bf16.msra.mxu0 0
        %1185 = vmatprep.subr.bf16.mxu0 0
        %1186 = vmatpush1.bf16.msra.mxu0 0
        %1187 = vmatprep.mubr.bf16.mxu0 0
        %1188 = vmatmul.mubr.bf16.gmra.mrb[0].mxu0 %v1153
        %v1189 = vpop.f32.mrb[0].mxu0
        %v1190 = vadd.f32 0.0, %v1189
        %v1191 = vpop.f32.mrb[0].mxu0
        %v1192 = vpop.f32.mrb[0].mxu0
        %v1193 = vpop.f32.mrb[0].mxu0
        %1194 = vdwg.mxu0
        %v1196 = vsel %vm1137, %v1151, 0
        %1198 = vmatprep.subr.bf16.mxu0 0
        %1199 = vmatpush1.bf16.msra.mxu0 %v1009
        %1200 = vmatprep.subr.bf16.mxu0 0
        %1201 = vmatpush1.bf16.msra.mxu0 %v1010
        %1202 = vmatprep.subr.bf16.mxu0 0
        %1203 = vmatpush1.bf16.msra.mxu0 %v1011
        %1204 = vmatprep.subr.bf16.mxu0 0
        %1205 = vmatpush1.bf16.msra.mxu0 %v1012
        %1206 = vmatprep.subr.bf16.mxu0 0
        %1207 = vmatpush1.bf16.msra.mxu0 %v1013
        %1208 = vmatprep.subr.bf16.mxu0 0
        %1209 = vmatpush1.bf16.msra.mxu0 %v1014
        %1210 = vmatprep.subr.bf16.mxu0 0
        %1211 = vmatpush1.bf16.msra.mxu0 0
        %1212 = vmatprep.subr.bf16.mxu0 0
        %1213 = vmatpush1.bf16.msra.mxu0 0
        %1214 = vmatprep.subr.bf16.mxu0 0
        %1215 = vmatpush1.bf16.msra.mxu0 0
        %1216 = vmatprep.subr.bf16.mxu0 0
        %1217 = vmatpush1.bf16.msra.mxu0 0
        %1218 = vmatprep.subr.bf16.mxu0 0
        %1219 = vmatpush1.bf16.msra.mxu0 0
        %1220 = vmatprep.subr.bf16.mxu0 0
        %1221 = vmatpush1.bf16.msra.mxu0 0
        %1222 = vmatprep.subr.bf16.mxu0 0
        %1223 = vmatpush1.bf16.msra.mxu0 0
        %1224 = vmatprep.subr.bf16.mxu0 0
        %1225 = vmatpush1.bf16.msra.mxu0 0
        %1226 = vmatprep.subr.bf16.mxu0 0
        %1227 = vmatpush1.bf16.msra.mxu0 0
        %1228 = vmatprep.subr.bf16.mxu0 0
        %1229 = vmatpush1.bf16.msra.mxu0 0
        %1230 = vmatprep.mubr.bf16.mxu0 0
        %1231 = vmatmul.mubr.bf16.gmra.mrb[0].mxu0 %v1196
        %v1232 = vpop.f32.mrb[0].mxu0
        %v1233 = vadd.f32 0.0, %v1232
        %v1234 = vpop.f32.mrb[0].mxu0
        %v1235 = vpop.f32.mrb[0].mxu0
        %v1236 = vpop.f32.mrb[0].mxu0
        %1237 = vdwg.mxu0
        %1238 = vmatprep.subr.bf16.mxu0 0
        %1239 = vmatpush1.bf16.msra.mxu0 %v973
        %1240 = vmatprep.subr.bf16.mxu0 0
        %1241 = vmatpush1.bf16.msra.mxu0 %v974
        %1242 = vmatprep.subr.bf16.mxu0 0
        %1243 = vmatpush1.bf16.msra.mxu0 %v975
        %1244 = vmatprep.subr.bf16.mxu0 0
        %1245 = vmatpush1.bf16.msra.mxu0 %v976
        %1246 = vmatprep.subr.bf16.mxu0 0
        %1247 = vmatpush1.bf16.msra.mxu0 %v977
        %1248 = vmatprep.subr.bf16.mxu0 0
        %1249 = vmatpush1.bf16.msra.mxu0 %v978
        %1250 = vmatprep.subr.bf16.mxu0 0
        %1251 = vmatpush1.bf16.msra.mxu0 0
        %1252 = vmatprep.subr.bf16.mxu0 0
        %1253 = vmatpush1.bf16.msra.mxu0 0
        %1254 = vmatprep.subr.bf16.mxu0 0
        %1255 = vmatpush1.bf16.msra.mxu0 0
        %1256 = vmatprep.subr.bf16.mxu0 0
        %1257 = vmatpush1.bf16.msra.mxu0 0
        %1258 = vmatprep.subr.bf16.mxu0 0
        %1259 = vmatpush1.bf16.msra.mxu0 0
        %1260 = vmatprep.subr.bf16.mxu0 0
        %1261 = vmatpush1.bf16.msra.mxu0 0
        %1262 = vmatprep.subr.bf16.mxu0 0
        %1263 = vmatpush1.bf16.msra.mxu0 0
        %1264 = vmatprep.subr.bf16.mxu0 0
        %1265 = vmatpush1.bf16.msra.mxu0 0
        %1266 = vmatprep.subr.bf16.mxu0 0
        %1267 = vmatpush1.bf16.msra.mxu0 0
        %1268 = vmatprep.subr.bf16.mxu0 0
        %1269 = vmatpush1.bf16.msra.mxu0 0
        %1270 = vmatprep.mubr.bf16.mxu0 0
        %1271 = vmatmul.mubr.bf16.gmra.mrb[0].mxu0 %v1153
        %v1272 = vpop.f32.mrb[0].mxu0
        %v1273 = vadd.f32 0.0, %v1272
        %v1274 = vpop.f32.mrb[0].mxu0
        %v1275 = vpop.f32.mrb[0].mxu0
        %v1276 = vpop.f32.mrb[0].mxu0
        %1277 = vdwg.mxu0
        %1278 = vmatprep.subr.bf16.mxu0 0
        %1279 = vmatpush1.bf16.msra.mxu0 %v973
        %1280 = vmatprep.subr.bf16.mxu0 0
        %1281 = vmatpush1.bf16.msra.mxu0 %v974
        %1282 = vmatprep.subr.bf16.mxu0 0
        %1283 = vmatpush1.bf16.msra.mxu0 %v975
        %1284 = vmatprep.subr.bf16.mxu0 0
        %1285 = vmatpush1.bf16.msra.mxu0 %v976
        %1286 = vmatprep.subr.bf16.mxu0 0
        %1287 = vmatpush1.bf16.msra.mxu0 %v977
        %1288 = vmatprep.subr.bf16.mxu0 0
        %1289 = vmatpush1.bf16.msra.mxu0 %v978
        %1290 = vmatprep.subr.bf16.mxu0 0
        %1291 = vmatpush1.bf16.msra.mxu0 0
        %1292 = vmatprep.subr.bf16.mxu0 0
        %1293 = vmatpush1.bf16.msra.mxu0 0
        %1294 = vmatprep.subr.bf16.mxu0 0
        %1295 = vmatpush1.bf16.msra.mxu0 0
        %1296 = vmatprep.subr.bf16.mxu0 0
        %1297 = vmatpush1.bf16.msra.mxu0 0
        %1298 = vmatprep.subr.bf16.mxu0 0
        %1299 = vmatpush1.bf16.msra.mxu0 0
        %1300 = vmatprep.subr.bf16.mxu0 0
        %1301 = vmatpush1.bf16.msra.mxu0 0
        %1302 = vmatprep.subr.bf16.mxu0 0
        %1303 = vmatpush1.bf16.msra.mxu0 0
        %1304 = vmatprep.subr.bf16.mxu0 0
        %1305 = vmatpush1.bf16.msra.mxu0 0
        %1306 = vmatprep.subr.bf16.mxu0 0
        %1307 = vmatpush1.bf16.msra.mxu0 0
        %1308 = vmatprep.subr.bf16.mxu0 0
        %1309 = vmatpush1.bf16.msra.mxu0 0
        %1310 = vmatprep.mubr.bf16.mxu0 0
        %1311 = vmatmul.mubr.bf16.gmra.mrb[0].mxu0 %v1196
        %v1312 = vpop.f32.mrb[0].mxu0
        %v1313 = vadd.f32 0.0, %v1312
        %v1314 = vpop.f32.mrb[0].mxu0
        %v1315 = vpop.f32.mrb[0].mxu0
        %v1316 = vpop.f32.mrb[0].mxu0
        %1317 = vdwg.mxu0
        %v1318 = vrcp.pop %v1273
        %v1319 = vrcp.pop %v1313
        %v1320 = vmul.f32 %v1190, %v1318
        %v1321 = vmul.f32 %v1233, %v1319
        %v1322 = vpack.c.bf16 %v1320, %v1320
        %v1323 = vpack.c.bf16 %v1321, %v1321
        %v1324 = vld [vmem:[%s552] sm:$0xf]
        %v1325 = vld [vmem:[%s552 + $0x4] sm:$0xf]
        %v1326 = vld [vmem:[%s552 + $0x8] sm:$0xf]
        %v1327 = vld [vmem:[%s552 + $0xc] sm:$0xf]
        %v1330 = vunpack.c.l.b16 %v1322
        %v1331 = vunpack.c.l.b16 %v1323
        %v1332 = vpack.c.b16 %v1331, %v1330
        %v1337 = vunpack.c.l.b16 %v1324
        %v1338 = vunpack.c.l.b16 %v1325
        %v1339 = vunpack.c.l.b16 %v1326
        %v1340 = vunpack.c.l.b16 %v1327
        %v1341 = vpack.c.b16 %v1338, %v1337
        %v1342 = vpack.c.b16 %v1340, %v1339
        %v1346 = vsel %vm564, %v1332, 0
        %1348 = vmatprep.subr.bf16.mxu0 0
        %1349 = vmatpush1.bf16.msra.mxu0 %v1341
        %1350 = vmatprep.subr.bf16.mxu0 0
        %1351 = vmatpush1.bf16.msra.mxu0 %v1342
        %1352 = vmatprep.subr.bf16.mxu0 0
        %1353 = vmatpush1.bf16.msra.mxu0 0
        %1354 = vmatprep.subr.bf16.mxu0 0
        %1355 = vmatpush1.bf16.msra.mxu0 0
        %1356 = vmatprep.subr.bf16.mxu0 0
        %1357 = vmatpush1.bf16.msra.mxu0 0
        %1358 = vmatprep.subr.bf16.mxu0 0
        %1359 = vmatpush1.bf16.msra.mxu0 0
        %1360 = vmatprep.subr.bf16.mxu0 0
        %1361 = vmatpush1.bf16.msra.mxu0 0
        %1362 = vmatprep.subr.bf16.mxu0 0
        %1363 = vmatpush1.bf16.msra.mxu0 0
        %1364 = vmatprep.subr.bf16.mxu0 0
        %1365 = vmatpush1.bf16.msra.mxu0 0
        %1366 = vmatprep.subr.bf16.mxu0 0
        %1367 = vmatpush1.bf16.msra.mxu0 0
        %1368 = vmatprep.subr.bf16.mxu0 0
        %1369 = vmatpush1.bf16.msra.mxu0 0
        %1370 = vmatprep.subr.bf16.mxu0 0
        %1371 = vmatpush1.bf16.msra.mxu0 0
        %1372 = vmatprep.subr.bf16.mxu0 0
        %1373 = vmatpush1.bf16.msra.mxu0 0
        %1374 = vmatprep.subr.bf16.mxu0 0
        %1375 = vmatpush1.bf16.msra.mxu0 0
        %1376 = vmatprep.subr.bf16.mxu0 0
        %1377 = vmatpush1.bf16.msra.mxu0 0
        %1378 = vmatprep.subr.bf16.mxu0 0
        %1379 = vmatpush1.bf16.msra.mxu0 0
        %1380 = vmatprep.mubr.bf16.mxu0 0
        %1381 = vmatmul.mubr.bf16.gmra.mrb[0].mxu0 %v1346
        %v1382 = vpop.f32.mrb[0].mxu0
        %v1383 = vadd.f32 0.0, %v1382
        %v1384 = vpop.f32.mrb[0].mxu0
        %v1385 = vpop.f32.mrb[0].mxu0
        %v1386 = vadd.f32 0.0, %v1385
        %v1387 = vpop.f32.mrb[0].mxu0
        %1388 = vdwg.mxu0
        %1389 = vst.msk [vmem:[%s506] sm:$0xff] %vm564, %v1383
        %1390 = vst.msk [vmem:[%s506 + $0x8] sm:$0xff] %vm564, %v1386
        %s1391 = sand.u32 %s314, 1
        %s1392 = scalar_lea.sflag [#allocation3], %s1391
        %s1393 = sand.u32 %s314, 1
        %s1394 = smul.addr %s1393, 16
        %s1395 = scalar_lea.vmem [#allocation2], %s1394
        // Predicated region
        $region65: #{tpu_custom_call.1} parent=63 // pred_check
          %p1396 = pneg %p324
        $region66: #{tpu_custom_call.1} parent=63 // pred_check_branch
          %1398 = sbr.rel (%p1396) target = $region68
        $region67: #{tpu_custom_call.1} parent=63 // pred_region
          %s1400 = ssub.s32 256, 256
          %1401 = vsyncadd %s1392, %s1400
          %s1402 = smul.addr %s25, 2
          %s1403 = smul.addr %s1402, 128
          %s1404 = scalar_lea.hbm %s11, %s1403
          %s1405 = sshll.u32 %s1395, 4
          %s1406 = int_to_ptr.vmem [resolvable:$true] %s1405
          %1411 = dma.vmem_to_hbm [thread:$0]  %s1406, 256, %s1404, %s1392, 128, 128, 8
        $region68: #{tpu_custom_call.1} parent=63 // pred_fallthru
          _
      $region64: #{tpu_custom_call.1} parent=5 // pred_fallthru
        _
      %p1412 = scmp.le.s32.totalorder 2, %s20
      // Predicated region
      $region69: #{tpu_custom_call.1} parent=5 // pred_check
        %p1413 = pneg %p1412
      $region70: #{tpu_custom_call.1} parent=5 // pred_check_branch
        %1415 = sbr.rel (%p1413) target = $region72
      $region71: #{tpu_custom_call.1} parent=5 // pred_region
        %s1416 = ssub.s32 %s20, 2
        // Predicated region
        $region73: #{tpu_custom_call.1} parent=71 // pred_check
          %p1417 = pneg %p330
        $region74: #{tpu_custom_call.1} parent=71 // pred_check_branch
          %1419 = sbr.rel (%p1417) target = $region76
        $region75: #{tpu_custom_call.1} parent=71 // pred_region
          %s1420 = sand.u32 %s315, 1
          %s1421 = scalar_lea.sflag [#allocation3], %s1420
          %s1422 = sand.u32 %s315, 1
          %s1423 = smul.addr %s1422, 16
          %s1424 = scalar_lea.vmem [#allocation2], %s1423
          %1425 = dma.done %s1421, 256
        $region76: #{tpu_custom_call.1} parent=71 // pred_fallthru
          _
      $region72: #{tpu_custom_call.1} parent=5 // pred_fallthru
        _
    $region6: #{tpu_custom_call.1} parent=1 // loop_footer
      %s24 = sadd.s32 1, %s20
    $region7: #{tpu_custom_call.1} parent=1 // loop_footer_branch
      %19 = sbr.rel target = $region3
    $region8: #{tpu_custom_call.1} parent=1 // loop_exit
      _
    %1426 = vsyncpa [#allocation3], 1
    %s1427 = scalar_lea.sflag [#allocation3], 1
    %1428 = vsyncpa %s1427, 1

</llo_original>
